<compile_context>
chip_gen: v7x
topology: tpu7x:2x2x1
jax: 0.10.0
libtpu: 0.0.40
codegen_flags: <defaults>
</compile_context>

<pallas_src>
import jax
import jax.numpy as jnp
from jax.experimental import pallas as pl
from jax.experimental.pallas import tpu as pltpu

LATENT_DIM = 128
HIDDEN_DIM = 256
POS_ENC_L = 10
POS_ENC_DIM = 3 * 2 * POS_ENC_L           # 60
INPUT_DIM = LATENT_DIM + POS_ENC_DIM + 3  # 191
PADDED_IN_DIM = 192                       # INPUT_DIM padded with one zero column
COLOR_IN_DIM = INPUT_DIM + 1              # 192 (handled via rank-1 sigma injection)


def nerf_kernel(x_ref, wf_ref, bf_ref, w1_ref, b1_ref, w2t_ref, b2_ref,
                csig_ref, cw1_ref, cb1_ref, out_ref):
    # x: [tn, 192] bf16 = [z | pos_enc(points) | view_dirs | 0], built in wrapper.
    x = x_ref[...]

    # Fused first layers of sigma_net and color_net: [tn,192] @ [192,512] (one MXU pass).
    h = jnp.dot(x, wf_ref[...], preferred_element_type=jnp.float32) + bf_ref[...]
    h0 = jnp.maximum(h[:, :HIDDEN_DIM], 0.0)          # sigma_net layer-1 activation
    c_pre = h[:, HIDDEN_DIM:]                          # color_net layer-1 pre-act (x part + bias)

    # sigma_net layer 2 (256 -> 256)
    h1 = jnp.dot(h0.astype(jnp.bfloat16), w1_ref[...],
                 preferred_element_type=jnp.float32) + b1_ref[...]
    h1 = jnp.maximum(h1, 0.0)

    # sigma_net layer 3 (256 -> 1): VPU multiply + lane reduce (avoid 1-wide MXU pass).
    sigma = jnp.sum(h1 * w2t_ref[...], axis=-1, keepdims=True) + b2_ref[...]   # [tn, 1] f32

    # color_net layer 1: rank-1 sigma injection replaces concat([inputs, sigma]).
    ch = jnp.maximum(c_pre + sigma * csig_ref[...], 0.0)                        # [tn, 256] f32

    # color_net layer 2 (256 -> 3)
    color = jnp.dot(ch.astype(jnp.bfloat16), cw1_ref[...],
                    preferred_element_type=jnp.float32) + cb1_ref[...]          # [tn, 3] f32

    # Single store of the merged [tn, 4] output block.
    out_ref[...] = jnp.concatenate([sigma, color], axis=-1)


def nerf_forward(z, points, view_dirs, params, *, tn=512):
    (w0, b0, w1, b1, w2, b2, cw0, cb0, cw1, cb1) = params
    N = z.shape[0]

    # ---- host-side (XLA) prep: positional encoding + feature concat, f32 ----
    enc = []
    for i in range(POS_ENC_L):
        s = (2.0 ** i) * points
        enc.append(jnp.sin(s))
        enc.append(jnp.cos(s))
    x = jnp.concatenate(
        [z] + enc + [view_dirs, jnp.zeros((N, 1), jnp.float32)], axis=-1)  # [N, 192]

    grid_n = pl.cdiv(N, tn)
    n_pad = grid_n * tn
    if n_pad != N:
        x = jnp.pad(x, ((0, n_pad - N), (0, 0)))
    x = x.astype(jnp.bfloat16)

    # ---- host-side weight packing ----
    # fused first layer: [192, 512] = [w0 | cw0[:191]] plus a zero pad row.
    wf = jnp.concatenate([w0, cw0[:INPUT_DIM]], axis=1)                    # [191, 512]
    wf = jnp.concatenate(
        [wf, jnp.zeros((PADDED_IN_DIM - INPUT_DIM, 2 * HIDDEN_DIM), jnp.float32)],
        axis=0).astype(jnp.bfloat16)                                       # [192, 512] bf16
    bf = jnp.concatenate([b0, cb0], axis=1)                                # [1, 512] f32
    w1_bf = w1.astype(jnp.bfloat16)                                        # [256, 256] bf16
    w2t = jnp.transpose(w2)                                                # [1, 256] f32
    csig = cw0[INPUT_DIM:INPUT_DIM + 1]                                    # [1, 256] f32
    cw1_bf = cw1.astype(jnp.bfloat16)                                      # [256, 3] bf16

    def row_spec(d):
        return pl.BlockSpec((tn, d), lambda i: (i, 0))

    def full_spec(shape):
        return pl.BlockSpec(shape, lambda i, _s=shape: tuple(0 for _ in _s))

    out = pl.pallas_call(
        nerf_kernel,
        grid=(grid_n,),
        in_specs=[
            row_spec(PADDED_IN_DIM),                       # x
            full_spec(wf.shape), full_spec(bf.shape),      # fused layer-1 W, b
            full_spec(w1_bf.shape), full_spec(b1.shape),   # sigma layer-2
            full_spec(w2t.shape), full_spec(b2.shape),     # sigma head
            full_spec(csig.shape),                         # sigma column of color W
            full_spec(cw1_bf.shape), full_spec(cb1.shape), # color layer-2
        ],
        out_specs=row_spec(4),
        out_shape=jax.ShapeDtypeStruct((n_pad, 4), jnp.float32),
        compiler_params=pltpu.CompilerParams(
            dimension_semantics=("parallel",)),
    )(x, wf, bf, w1_bf, b1, w2t, b2, csig, cw1_bf, cb1)

    sigma = out[:N, 0:1]
    color = out[:N, 1:4]
    return sigma, color


def init_params(key):
    """Deterministic synthetic weights; Linear stored as [in, out], bias as [1, out]."""
    ks = jax.random.split(key, 10)

    def lin(k, fan_in, fan_out):
        scale = 1.0 / jnp.sqrt(fan_in)
        w = jax.random.uniform(k, (fan_in, fan_out), jnp.float32, -scale, scale)
        kb = jax.random.fold_in(k, 1)
        b = jax.random.uniform(kb, (1, fan_out), jnp.float32, -scale, scale)
        return w, b

    w0, b0 = lin(ks[0], INPUT_DIM, HIDDEN_DIM)
    w1, b1 = lin(ks[1], HIDDEN_DIM, HIDDEN_DIM)
    w2, b2 = lin(ks[2], HIDDEN_DIM, 1)
    cw0, cb0 = lin(ks[3], COLOR_IN_DIM, HIDDEN_DIM)
    cw1, cb1 = lin(ks[4], HIDDEN_DIM, 3)
    return (w0, b0, w1, b1, w2, b2, cw0, cb0, cw1, cb1)


def nerf_reference(z, points, view_dirs, params):
    """Pure-JAX f32 reference mirroring the PyTorch module."""
    (w0, b0, w1, b1, w2, b2, cw0, cb0, cw1, cb1) = params
    enc = []
    for i in range(POS_ENC_L):
        enc.append(jnp.sin(2.0 ** i * points))
        enc.append(jnp.cos(2.0 ** i * points))
    pts_enc = jnp.concatenate(enc, axis=-1)
    x = jnp.concatenate([z, pts_enc, view_dirs], axis=-1)
    h = jnp.maximum(x @ w0 + b0, 0.0)
    h = jnp.maximum(h @ w1 + b1, 0.0)
    sigma = h @ w2 + b2
    ci = jnp.concatenate([x, sigma], axis=-1)
    ch = jnp.maximum(ci @ cw0 + cb0, 0.0)
    color = ch @ cw1 + cb1
    return sigma, color


if __name__ == "__main__":
    key = jax.random.PRNGKey(0)
    k_z, k_p, k_d, k_w = jax.random.split(key, 4)

    N = 512   # number of sampled points; tiled by tn=256 -> grid length 2
    z = jax.random.normal(k_z, (N, LATENT_DIM), jnp.float32)
    points = jax.random.uniform(k_p, (N, 3), jnp.float32, -1.0, 1.0)
    view_dirs = jax.random.normal(k_d, (N, 3), jnp.float32)
    view_dirs = view_dirs / jnp.linalg.norm(view_dirs, axis=-1, keepdims=True)

    params = init_params(k_w)

    sigma, color = nerf_forward(z, points, view_dirs, params, tn=256)
    jax.block_until_ready((sigma, color))

    # sanity check against the pure-JAX f32 reference (bf16 matmul operands -> loose tol)
    sigma_ref, color_ref = nerf_reference(z, points, view_dirs, params)
    assert sigma.shape == (N, 1) and color.shape == (N, 3)
    assert bool(jnp.allclose(sigma, sigma_ref, atol=5e-2, rtol=5e-2))
    assert bool(jnp.allclose(color, color_ref, atol=5e-2, rtol=5e-2))

    print("KERNEL_OK")
</pallas_src>

<mosaic_0001>
module attributes {stable_mosaic.version = 11 : i64} {
  func.func @nerf_kernel(%arg0: i32, %arg1: memref<256x192xbf16, #tpu.memory_space<vmem>>, %arg2: memref<192x512xbf16, #tpu.memory_space<vmem>>, %arg3: memref<1x512xf32, #tpu.memory_space<vmem>>, %arg4: memref<256x256xbf16, #tpu.memory_space<vmem>>, %arg5: memref<1x256xf32, #tpu.memory_space<vmem>>, %arg6: memref<1x256xf32, #tpu.memory_space<vmem>>, %arg7: memref<1x1xf32, #tpu.memory_space<vmem>>, %arg8: memref<1x256xf32, #tpu.memory_space<vmem>>, %arg9: memref<256x3xbf16, #tpu.memory_space<vmem>>, %arg10: memref<1x3xf32, #tpu.memory_space<vmem>>, %arg11: memref<256x4xf32, #tpu.memory_space<vmem>>) attributes {dimension_semantics = [#tpu.dimension_semantics<parallel>], iteration_bounds = array<i64: 2>, scalar_prefetch = 0 : i64, scratch_operands = 0 : i64, tpu.core_type = #tpu.core_type<tc>, window_params = [{transform_indices = @transform_0, window_bounds = array<i64: 256, 192>}, {pipeline_mode = #tpu.pipeline_mode<synchronous>, transform_indices = @transform_1, window_bounds = array<i64: 192, 512>}, {pipeline_mode = #tpu.pipeline_mode<synchronous>, transform_indices = @transform_2, window_bounds = array<i64: 1, 512>}, {pipeline_mode = #tpu.pipeline_mode<synchronous>, transform_indices = @transform_3, window_bounds = array<i64: 256, 256>}, {pipeline_mode = #tpu.pipeline_mode<synchronous>, transform_indices = @transform_4, window_bounds = array<i64: 1, 256>}, {pipeline_mode = #tpu.pipeline_mode<synchronous>, transform_indices = @transform_5, window_bounds = array<i64: 1, 256>}, {pipeline_mode = #tpu.pipeline_mode<synchronous>, transform_indices = @transform_6, window_bounds = array<i64: 1, 1>}, {pipeline_mode = #tpu.pipeline_mode<synchronous>, transform_indices = @transform_7, window_bounds = array<i64: 1, 256>}, {pipeline_mode = #tpu.pipeline_mode<synchronous>, transform_indices = @transform_8, window_bounds = array<i64: 256, 3>}, {pipeline_mode = #tpu.pipeline_mode<synchronous>, transform_indices = @transform_9, window_bounds = array<i64: 1, 3>}, {transform_indices = @transform_10, window_bounds = array<i64: 256, 4>}]} {
    %c0 = arith.constant 0 : index
    %c0_0 = arith.constant 0 : index
    %0 = vector.load %arg1[%c0, %c0_0] : memref<256x192xbf16, #tpu.memory_space<vmem>>, vector<256x192xbf16>
    %c0_1 = arith.constant 0 : index
    %c0_2 = arith.constant 0 : index
    %1 = vector.load %arg2[%c0_1, %c0_2] : memref<192x512xbf16, #tpu.memory_space<vmem>>, vector<192x512xbf16>
    %cst = arith.constant dense<0.000000e+00> : vector<256x512xf32>
    %2 = tpu.matmul %0, %1, %cst {dimension_numbers = #tpu.dot_dimension_numbers<[1], [0], [0], [1], [0, 0, 1, 1], [], []>} : vector<256x192xbf16>, vector<192x512xbf16>, vector<256x512xf32> -> vector<256x512xf32>
    %c0_3 = arith.constant 0 : index
    %c0_4 = arith.constant 0 : index
    %3 = vector.load %arg3[%c0_3, %c0_4] : memref<1x512xf32, #tpu.memory_space<vmem>>, vector<1x512xf32>
    %4 = vector.broadcast %3 : vector<1x512xf32> to vector<256x512xf32>
    %5 = arith.addf %2, %4 : vector<256x512xf32>
    %6 = vector.extract_strided_slice %5 {offsets = [0, 0], sizes = [256, 256], strides = [1, 1]} : vector<256x512xf32> to vector<256x256xf32>
    %cst_5 = arith.constant 0.000000e+00 : f32
    %7 = vector.broadcast %cst_5 : f32 to vector<256x256xf32>
    %8 = arith.maximumf %6, %7 : vector<256x256xf32>
    %9 = vector.extract_strided_slice %5 {offsets = [0, 256], sizes = [256, 256], strides = [1, 1]} : vector<256x512xf32> to vector<256x256xf32>
    %10 = arith.truncf %8 : vector<256x256xf32> to vector<256x256xbf16>
    %c0_6 = arith.constant 0 : index
    %c0_7 = arith.constant 0 : index
    %11 = vector.load %arg4[%c0_6, %c0_7] : memref<256x256xbf16, #tpu.memory_space<vmem>>, vector<256x256xbf16>
    %cst_8 = arith.constant dense<0.000000e+00> : vector<256x256xf32>
    %12 = tpu.matmul %10, %11, %cst_8 {dimension_numbers = #tpu.dot_dimension_numbers<[1], [0], [0], [1], [0, 0, 1, 1], [], []>} : vector<256x256xbf16>, vector<256x256xbf16>, vector<256x256xf32> -> vector<256x256xf32>
    %c0_9 = arith.constant 0 : index
    %c0_10 = arith.constant 0 : index
    %13 = vector.load %arg5[%c0_9, %c0_10] : memref<1x256xf32, #tpu.memory_space<vmem>>, vector<1x256xf32>
    %14 = vector.broadcast %13 : vector<1x256xf32> to vector<256x256xf32>
    %15 = arith.addf %12, %14 : vector<256x256xf32>
    %cst_11 = arith.constant 0.000000e+00 : f32
    %16 = vector.broadcast %cst_11 : f32 to vector<256x256xf32>
    %17 = arith.maximumf %15, %16 : vector<256x256xf32>
    %c0_12 = arith.constant 0 : index
    %c0_13 = arith.constant 0 : index
    %18 = vector.load %arg6[%c0_12, %c0_13] : memref<1x256xf32, #tpu.memory_space<vmem>>, vector<1x256xf32>
    %19 = vector.broadcast %18 : vector<1x256xf32> to vector<256x256xf32>
    %20 = arith.mulf %17, %19 : vector<256x256xf32>
    %cst_14 = arith.constant dense<0.000000e+00> : vector<256xf32>
    %21 = vector.multi_reduction <add>, %20, %cst_14 [1] : vector<256x256xf32> to vector<256xf32>
    %22 = vector.shape_cast %21 : vector<256xf32> to vector<256x1xf32>
    %c0_15 = arith.constant 0 : index
    %c0_16 = arith.constant 0 : index
    %23 = vector.load %arg7[%c0_15, %c0_16] : memref<1x1xf32, #tpu.memory_space<vmem>>, vector<1x1xf32>
    %24 = vector.broadcast %23 : vector<1x1xf32> to vector<256x1xf32>
    %25 = arith.addf %22, %24 : vector<256x1xf32>
    %c0_17 = arith.constant 0 : index
    %c0_18 = arith.constant 0 : index
    %26 = vector.load %arg8[%c0_17, %c0_18] : memref<1x256xf32, #tpu.memory_space<vmem>>, vector<1x256xf32>
    %27 = vector.broadcast %25 : vector<256x1xf32> to vector<256x256xf32>
    %28 = vector.broadcast %26 : vector<1x256xf32> to vector<256x256xf32>
    %29 = arith.mulf %27, %28 : vector<256x256xf32>
    %30 = arith.addf %9, %29 : vector<256x256xf32>
    %cst_19 = arith.constant 0.000000e+00 : f32
    %31 = vector.broadcast %cst_19 : f32 to vector<256x256xf32>
    %32 = arith.maximumf %30, %31 : vector<256x256xf32>
    %33 = arith.truncf %32 : vector<256x256xf32> to vector<256x256xbf16>
    %c0_20 = arith.constant 0 : index
    %c0_21 = arith.constant 0 : index
    %34 = vector.load %arg9[%c0_20, %c0_21] : memref<256x3xbf16, #tpu.memory_space<vmem>>, vector<256x3xbf16>
    %cst_22 = arith.constant dense<0.000000e+00> : vector<256x3xf32>
    %35 = tpu.matmul %33, %34, %cst_22 {dimension_numbers = #tpu.dot_dimension_numbers<[1], [0], [0], [1], [0, 0, 1, 1], [], []>} : vector<256x256xbf16>, vector<256x3xbf16>, vector<256x3xf32> -> vector<256x3xf32>
    %c0_23 = arith.constant 0 : index
    %c0_24 = arith.constant 0 : index
    %36 = vector.load %arg10[%c0_23, %c0_24] : memref<1x3xf32, #tpu.memory_space<vmem>>, vector<1x3xf32>
    %37 = vector.broadcast %36 : vector<1x3xf32> to vector<256x3xf32>
    %38 = arith.addf %35, %37 : vector<256x3xf32>
    %39 = tpu.concatenate %25, %38 in 1 : vector<256x1xf32>, vector<256x3xf32> -> vector<256x4xf32>
    %c0_25 = arith.constant 0 : index
    %c0_26 = arith.constant 0 : index
    %40 = vector.load %arg11[%c0_25, %c0_26] : memref<256x4xf32, #tpu.memory_space<vmem>>, vector<256x4xf32>
    tpu.vector_store %arg11[%c0_25, %c0_26], %39 {strides = array<i32>} : memref<256x4xf32, #tpu.memory_space<vmem>>, vector<256x4xf32>,
    return
  }
  func.func @transform_0(%arg0: i32) -> (i32, i32) {
    %c0_i32 = arith.constant 0 : i32
    %c0_i32_0 = arith.constant 0 : i32
    return %arg0, %c0_i32 : i32, i32
  }
  func.func @transform_1(%arg0: i32) -> (i32, i32) {
    %c0_i32 = arith.constant 0 : i32
    %c0_i32_0 = arith.constant 0 : i32
    %c0_i32_1 = arith.constant 0 : i32
    return %c0_i32, %c0_i32_0 : i32, i32
  }
  func.func @transform_2(%arg0: i32) -> (i32, i32) {
    %c0_i32 = arith.constant 0 : i32
    %c0_i32_0 = arith.constant 0 : i32
    %c0_i32_1 = arith.constant 0 : i32
    return %c0_i32, %c0_i32_0 : i32, i32
  }
  func.func @transform_3(%arg0: i32) -> (i32, i32) {
    %c0_i32 = arith.constant 0 : i32
    %c0_i32_0 = arith.constant 0 : i32
    %c0_i32_1 = arith.constant 0 : i32
    return %c0_i32, %c0_i32_0 : i32, i32
  }
  func.func @transform_4(%arg0: i32) -> (i32, i32) {
    %c0_i32 = arith.constant 0 : i32
    %c0_i32_0 = arith.constant 0 : i32
    %c0_i32_1 = arith.constant 0 : i32
    return %c0_i32, %c0_i32_0 : i32, i32
  }
  func.func @transform_5(%arg0: i32) -> (i32, i32) {
    %c0_i32 = arith.constant 0 : i32
    %c0_i32_0 = arith.constant 0 : i32
    %c0_i32_1 = arith.constant 0 : i32
    return %c0_i32, %c0_i32_0 : i32, i32
  }
  func.func @transform_6(%arg0: i32) -> (i32, i32) {
    %c0_i32 = arith.constant 0 : i32
    %c0_i32_0 = arith.constant 0 : i32
    %c0_i32_1 = arith.constant 0 : i32
    return %c0_i32, %c0_i32_0 : i32, i32
  }
  func.func @transform_7(%arg0: i32) -> (i32, i32) {
    %c0_i32 = arith.constant 0 : i32
    %c0_i32_0 = arith.constant 0 : i32
    %c0_i32_1 = arith.constant 0 : i32
    return %c0_i32, %c0_i32_0 : i32, i32
  }
  func.func @transform_8(%arg0: i32) -> (i32, i32) {
    %c0_i32 = arith.constant 0 : i32
    %c0_i32_0 = arith.constant 0 : i32
    %c0_i32_1 = arith.constant 0 : i32
    return %c0_i32, %c0_i32_0 : i32, i32
  }
  func.func @transform_9(%arg0: i32) -> (i32, i32) {
    %c0_i32 = arith.constant 0 : i32
    %c0_i32_0 = arith.constant 0 : i32
    %c0_i32_1 = arith.constant 0 : i32
    return %c0_i32, %c0_i32_0 : i32, i32
  }
  func.func @transform_10(%arg0: i32) -> (i32, i32) {
    %c0_i32 = arith.constant 0 : i32
    %c0_i32_0 = arith.constant 0 : i32
    return %arg0, %c0_i32 : i32, i32
  }
}

</mosaic_0001>

<llo_original>
// kernel: tpu_custom_call.1
$region0: #{tpu_custom_call.1}
  #allocation0 [shape = 'u32[]', space=smem, size = 0x4, offset = 0x4, fixed_abs, tag = 'smem constant byte address 0x4 - core index']
  #allocation1 [shape = 'u32[144,128]{1,0:T(1,128)}', space=vmem, size = 0x12000, scoped, tag = 'internal scratch']
  #allocation2 [shape = 'f32[1,1]{1,0:T(1,128)S(1)}', space=vmem, size = 0x200, scoped, tag = 'scoped memory for tpu_custom_call.1']
  %s0 = inlined_call_operand.vmem [shape: bf16[512,192], index: 0, kind: input, shape index: {}]
  %s1 = inlined_call_operand.vmem [shape: bf16[192,512], index: 1, kind: input, shape index: {}]
  %s2 = inlined_call_operand.vmem [shape: f32[1,512], index: 2, kind: input, shape index: {}]
  %s3 = inlined_call_operand.vmem [shape: bf16[256,256], index: 3, kind: input, shape index: {}]
  %s4 = inlined_call_operand.vmem [shape: f32[1,256], index: 4, kind: input, shape index: {}]
  %s5 = inlined_call_operand.vmem [shape: f32[1,256], index: 5, kind: input, shape index: {}]
  %s6 = inlined_call_operand.<no memory space> [shape: f32[1,1], index: 6, kind: input, shape index: {}]
  %s7 = inlined_call_operand.vmem [shape: f32[1,256], index: 7, kind: input, shape index: {}]
  %s8 = inlined_call_operand.vmem [shape: bf16[256,3], index: 8, kind: input, shape index: {}]
  %s9 = inlined_call_operand.vmem [shape: f32[1,3], index: 9, kind: input, shape index: {}]
  %s10 = inlined_call_operand.vmem [shape: f32[512,4], index: 10, kind: output, shape index: {}]
  %s11 = sld [smem:[#allocation0]]
  $region73: #{tpu_custom_call.1} parent=0
    _
  %s13 = ssub.s32 1, %s11
  %s14 = scalar_select 0, %s13, %s11
  %v15 = vstv %s6
  %16 = vst [vmem:[#allocation2] sm:$0x1] %v15
  loop: start=0, step=1, limit=4
  $region2: #{tpu_custom_call.1} parent=0 // loop_pre_header
    _
  $region3: #{tpu_custom_call.1} parent=0 // loop_header
    %s18 = sphi 0, %s22
    %p19 = scmp.ge.s32.totalorder %s18, 4
    %s28 = sphi 0, %s30
    %s31 = sphi 0, %s28
    %s32 = sphi 0, %s31
    %s48 = sphi 0, %s32
    %s52 = sphi 0, %s52
    %s54 = sphi 0, %s52
    %s55 = sphi 0, %s54
    %s69 = sphi 0, %s55
    %s73 = sphi 0, %s73
    %s75 = sphi 0, %s73
    %s76 = sphi 0, %s75
    %s90 = sphi 0, %s76
    %s94 = sphi 0, %s94
    %s96 = sphi 0, %s94
    %s97 = sphi 0, %s96
    %s111 = sphi 0, %s97
    %s115 = sphi 0, %s115
    %s117 = sphi 0, %s115
    %s118 = sphi 0, %s117
    %s132 = sphi 0, %s118
    %s136 = sphi 0, %s136
    %s138 = sphi 0, %s136
    %s139 = sphi 0, %s138
    %s153 = sphi 0, %s139
    %s157 = sphi 0, %s157
    %s159 = sphi 0, %s157
    %s160 = sphi 0, %s159
    %s174 = sphi 0, %s160
    %s178 = sphi 0, %s178
    %s180 = sphi 0, %s178
    %s181 = sphi 0, %s180
    %s195 = sphi 0, %s181
    %s199 = sphi 0, %s199
    %s201 = sphi 0, %s199
    %s202 = sphi 0, %s201
    %s216 = sphi 0, %s202
    %s220 = sphi 0, %s220
    %s222 = sphi 0, %s220
    %s223 = sphi 0, %s222
    %s237 = sphi 0, %s223
    %s243 = sphi 0, %s245
    %s246 = sphi 0, %s243
    %s247 = sphi 0, %s246
    %s263 = sphi 0, %s247
  $region4: #{tpu_custom_call.1} parent=0 // loop_header_branch
    %21 = sbr.rel (%p19) target = $region8
  $region5: #{tpu_custom_call.1} parent=0 // loop_body
    %s23 = ssub.s32 %s18, 1
    %s24 = ssub.s32 %s18, 2
    %s25 = sadd.s32 %s18, 1
    %s26 = ssub.s32 %s18, %s25
    %p27 = scmp.eq.s32.totalorder %s26, 0
    %s29 = sadd.s32 %s28, 1
    %s30 = scalar_select %p27, %s28, %s29
    %p33 = pneg %p27
    %p34 = scmp.eq.s32.totalorder %s18, 1
    %p35 = por %p33, %p34
    %p36 = scmp.ne.s32.totalorder %s28, %s31
    %p37 = scmp.eq.s32.totalorder %s18, 0
    %p38 = por %p36, %p37
    %p39 = scmp.ne.s32.totalorder %s28, %s31
    %p40 = scmp.eq.s32.totalorder %s23, 1
    %p41 = por %p39, %p40
    %p42 = scmp.ne.s32.totalorder %s31, %s32
    %p43 = scmp.eq.s32.totalorder %s23, 0
    %p44 = por %p42, %p43
    %p45 = scmp.ne.s32.totalorder %s31, %s32
    %p46 = scmp.eq.s32.totalorder %s24, 1
    %p47 = por %p45, %p46
    %p49 = scmp.ne.s32.totalorder %s32, %s48
    %p50 = scmp.eq.s32.totalorder %s24, 0
    %p51 = por %p49, %p50
    %s53 = sadd.s32 %s52, 1
    %p56 = scmp.eq.s32.totalorder %s18, 1
    %p57 = scmp.ne.s32.totalorder %s52, %s54
    %p58 = scmp.eq.s32.totalorder %s18, 0
    %p59 = por %p57, %p58
    %p60 = scmp.ne.s32.totalorder %s52, %s54
    %p61 = scmp.eq.s32.totalorder %s23, 1
    %p62 = por %p60, %p61
    %p63 = scmp.ne.s32.totalorder %s54, %s55
    %p64 = scmp.eq.s32.totalorder %s23, 0
    %p65 = por %p63, %p64
    %p66 = scmp.ne.s32.totalorder %s54, %s55
    %p67 = scmp.eq.s32.totalorder %s24, 1
    %p68 = por %p66, %p67
    %p70 = scmp.ne.s32.totalorder %s55, %s69
    %p71 = scmp.eq.s32.totalorder %s24, 0
    %p72 = por %p70, %p71
    %s74 = sadd.s32 %s73, 1
    %p77 = scmp.eq.s32.totalorder %s18, 1
    %p78 = scmp.ne.s32.totalorder %s73, %s75
    %p79 = scmp.eq.s32.totalorder %s18, 0
    %p80 = por %p78, %p79
    %p81 = scmp.ne.s32.totalorder %s73, %s75
    %p82 = scmp.eq.s32.totalorder %s23, 1
    %p83 = por %p81, %p82
    %p84 = scmp.ne.s32.totalorder %s75, %s76
    %p85 = scmp.eq.s32.totalorder %s23, 0
    %p86 = por %p84, %p85
    %p87 = scmp.ne.s32.totalorder %s75, %s76
    %p88 = scmp.eq.s32.totalorder %s24, 1
    %p89 = por %p87, %p88
    %p91 = scmp.ne.s32.totalorder %s76, %s90
    %p92 = scmp.eq.s32.totalorder %s24, 0
    %p93 = por %p91, %p92
    %s95 = sadd.s32 %s94, 1
    %p98 = scmp.eq.s32.totalorder %s18, 1
    %p99 = scmp.ne.s32.totalorder %s94, %s96
    %p100 = scmp.eq.s32.totalorder %s18, 0
    %p101 = por %p99, %p100
    %p102 = scmp.ne.s32.totalorder %s94, %s96
    %p103 = scmp.eq.s32.totalorder %s23, 1
    %p104 = por %p102, %p103
    %p105 = scmp.ne.s32.totalorder %s96, %s97
    %p106 = scmp.eq.s32.totalorder %s23, 0
    %p107 = por %p105, %p106
    %p108 = scmp.ne.s32.totalorder %s96, %s97
    %p109 = scmp.eq.s32.totalorder %s24, 1
    %p110 = por %p108, %p109
    %p112 = scmp.ne.s32.totalorder %s97, %s111
    %p113 = scmp.eq.s32.totalorder %s24, 0
    %p114 = por %p112, %p113
    %s116 = sadd.s32 %s115, 1
    %p119 = scmp.eq.s32.totalorder %s18, 1
    %p120 = scmp.ne.s32.totalorder %s115, %s117
    %p121 = scmp.eq.s32.totalorder %s18, 0
    %p122 = por %p120, %p121
    %p123 = scmp.ne.s32.totalorder %s115, %s117
    %p124 = scmp.eq.s32.totalorder %s23, 1
    %p125 = por %p123, %p124
    %p126 = scmp.ne.s32.totalorder %s117, %s118
    %p127 = scmp.eq.s32.totalorder %s23, 0
    %p128 = por %p126, %p127
    %p129 = scmp.ne.s32.totalorder %s117, %s118
    %p130 = scmp.eq.s32.totalorder %s24, 1
    %p131 = por %p129, %p130
    %p133 = scmp.ne.s32.totalorder %s118, %s132
    %p134 = scmp.eq.s32.totalorder %s24, 0
    %p135 = por %p133, %p134
    %s137 = sadd.s32 %s136, 1
    %p140 = scmp.eq.s32.totalorder %s18, 1
    %p141 = scmp.ne.s32.totalorder %s136, %s138
    %p142 = scmp.eq.s32.totalorder %s18, 0
    %p143 = por %p141, %p142
    %p144 = scmp.ne.s32.totalorder %s136, %s138
    %p145 = scmp.eq.s32.totalorder %s23, 1
    %p146 = por %p144, %p145
    %p147 = scmp.ne.s32.totalorder %s138, %s139
    %p148 = scmp.eq.s32.totalorder %s23, 0
    %p149 = por %p147, %p148
    %p150 = scmp.ne.s32.totalorder %s138, %s139
    %p151 = scmp.eq.s32.totalorder %s24, 1
    %p152 = por %p150, %p151
    %p154 = scmp.ne.s32.totalorder %s139, %s153
    %p155 = scmp.eq.s32.totalorder %s24, 0
    %p156 = por %p154, %p155
    %s158 = sadd.s32 %s157, 1
    %p161 = scmp.eq.s32.totalorder %s18, 1
    %p162 = scmp.ne.s32.totalorder %s157, %s159
    %p163 = scmp.eq.s32.totalorder %s18, 0
    %p164 = por %p162, %p163
    %p165 = scmp.ne.s32.totalorder %s157, %s159
    %p166 = scmp.eq.s32.totalorder %s23, 1
    %p167 = por %p165, %p166
    %p168 = scmp.ne.s32.totalorder %s159, %s160
    %p169 = scmp.eq.s32.totalorder %s23, 0
    %p170 = por %p168, %p169
    %p171 = scmp.ne.s32.totalorder %s159, %s160
    %p172 = scmp.eq.s32.totalorder %s24, 1
    %p173 = por %p171, %p172
    %p175 = scmp.ne.s32.totalorder %s160, %s174
    %p176 = scmp.eq.s32.totalorder %s24, 0
    %p177 = por %p175, %p176
    %s179 = sadd.s32 %s178, 1
    %p182 = scmp.eq.s32.totalorder %s18, 1
    %p183 = scmp.ne.s32.totalorder %s178, %s180
    %p184 = scmp.eq.s32.totalorder %s18, 0
    %p185 = por %p183, %p184
    %p186 = scmp.ne.s32.totalorder %s178, %s180
    %p187 = scmp.eq.s32.totalorder %s23, 1
    %p188 = por %p186, %p187
    %p189 = scmp.ne.s32.totalorder %s180, %s181
    %p190 = scmp.eq.s32.totalorder %s23, 0
    %p191 = por %p189, %p190
    %p192 = scmp.ne.s32.totalorder %s180, %s181
    %p193 = scmp.eq.s32.totalorder %s24, 1
    %p194 = por %p192, %p193
    %p196 = scmp.ne.s32.totalorder %s181, %s195
    %p197 = scmp.eq.s32.totalorder %s24, 0
    %p198 = por %p196, %p197
    %s200 = sadd.s32 %s199, 1
    %p203 = scmp.eq.s32.totalorder %s18, 1
    %p204 = scmp.ne.s32.totalorder %s199, %s201
    %p205 = scmp.eq.s32.totalorder %s18, 0
    %p206 = por %p204, %p205
    %p207 = scmp.ne.s32.totalorder %s199, %s201
    %p208 = scmp.eq.s32.totalorder %s23, 1
    %p209 = por %p207, %p208
    %p210 = scmp.ne.s32.totalorder %s201, %s202
    %p211 = scmp.eq.s32.totalorder %s23, 0
    %p212 = por %p210, %p211
    %p213 = scmp.ne.s32.totalorder %s201, %s202
    %p214 = scmp.eq.s32.totalorder %s24, 1
    %p215 = por %p213, %p214
    %p217 = scmp.ne.s32.totalorder %s202, %s216
    %p218 = scmp.eq.s32.totalorder %s24, 0
    %p219 = por %p217, %p218
    %s221 = sadd.s32 %s220, 1
    %p224 = scmp.eq.s32.totalorder %s18, 1
    %p225 = scmp.ne.s32.totalorder %s220, %s222
    %p226 = scmp.eq.s32.totalorder %s18, 0
    %p227 = por %p225, %p226
    %p228 = scmp.ne.s32.totalorder %s220, %s222
    %p229 = scmp.eq.s32.totalorder %s23, 1
    %p230 = por %p228, %p229
    %p231 = scmp.ne.s32.totalorder %s222, %s223
    %p232 = scmp.eq.s32.totalorder %s23, 0
    %p233 = por %p231, %p232
    %p234 = scmp.ne.s32.totalorder %s222, %s223
    %p235 = scmp.eq.s32.totalorder %s24, 1
    %p236 = por %p234, %p235
    %p238 = scmp.ne.s32.totalorder %s223, %s237
    %p239 = scmp.eq.s32.totalorder %s24, 0
    %p240 = por %p238, %p239
    %s241 = ssub.s32 %s18, %s25
    %p242 = scmp.eq.s32.totalorder %s241, 0
    %s244 = sadd.s32 %s243, 1
    %s245 = scalar_select %p242, %s243, %s244
    %p248 = pneg %p242
    %p249 = scmp.eq.s32.totalorder %s18, 1
    %p250 = por %p248, %p249
    %p251 = scmp.ne.s32.totalorder %s243, %s246
    %p252 = scmp.eq.s32.totalorder %s18, 0
    %p253 = por %p251, %p252
    %p254 = scmp.ne.s32.totalorder %s243, %s246
    %p255 = scmp.eq.s32.totalorder %s23, 1
    %p256 = por %p254, %p255
    %p257 = scmp.ne.s32.totalorder %s246, %s247
    %p258 = scmp.eq.s32.totalorder %s23, 0
    %p259 = por %p257, %p258
    %p260 = scmp.ne.s32.totalorder %s246, %s247
    %p261 = scmp.eq.s32.totalorder %s24, 1
    %p262 = por %p260, %p261
    %p264 = scmp.ne.s32.totalorder %s247, %s263
    %p265 = scmp.eq.s32.totalorder %s24, 0
    %p266 = por %p264, %p265
    %p267 = scmp.le.s32.totalorder 1, %s18
    %p268 = scmp.lt.s32.totalorder %s18, 3
    %p269 = pnand %p267, %p268
    %p270 = pneg %p269
    // Predicated region
    $region9: #{tpu_custom_call.1} parent=5 // pred_check
      _
    $region10: #{tpu_custom_call.1} parent=5 // pred_check_branch
      %272 = sbr.rel (%p269) target = $region12
    $region11: #{tpu_custom_call.1} parent=5 // pred_region
      %s273 = ssub.s32 %s18, 1
      // Predicated region
      $region13: #{tpu_custom_call.1} parent=11 // pred_check
        %p274 = pneg %p65
      $region14: #{tpu_custom_call.1} parent=11 // pred_check_branch
        %276 = sbr.rel (%p274) target = $region16
      $region15: #{tpu_custom_call.1} parent=11 // pred_region
        _
      $region16: #{tpu_custom_call.1} parent=11 // pred_fallthru
        _
      // Predicated region
      $region17: #{tpu_custom_call.1} parent=11 // pred_check
        %p277 = pneg %p86
      $region18: #{tpu_custom_call.1} parent=11 // pred_check_branch
        %279 = sbr.rel (%p277) target = $region20
      $region19: #{tpu_custom_call.1} parent=11 // pred_region
        _
      $region20: #{tpu_custom_call.1} parent=11 // pred_fallthru
        _
      // Predicated region
      $region21: #{tpu_custom_call.1} parent=11 // pred_check
        %p280 = pneg %p107
      $region22: #{tpu_custom_call.1} parent=11 // pred_check_branch
        %282 = sbr.rel (%p280) target = $region24
      $region23: #{tpu_custom_call.1} parent=11 // pred_region
        _
      $region24: #{tpu_custom_call.1} parent=11 // pred_fallthru
        _
      // Predicated region
      $region25: #{tpu_custom_call.1} parent=11 // pred_check
        %p283 = pneg %p128
      $region26: #{tpu_custom_call.1} parent=11 // pred_check_branch
        %285 = sbr.rel (%p283) target = $region28
      $region27: #{tpu_custom_call.1} parent=11 // pred_region
        _
      $region28: #{tpu_custom_call.1} parent=11 // pred_fallthru
        _
      // Predicated region
      $region29: #{tpu_custom_call.1} parent=11 // pred_check
        %p286 = pneg %p149
      $region30: #{tpu_custom_call.1} parent=11 // pred_check_branch
        %288 = sbr.rel (%p286) target = $region32
      $region31: #{tpu_custom_call.1} parent=11 // pred_region
        _
      $region32: #{tpu_custom_call.1} parent=11 // pred_fallthru
        _
      // Predicated region
      $region33: #{tpu_custom_call.1} parent=11 // pred_check
        %p289 = pneg %p170
      $region34: #{tpu_custom_call.1} parent=11 // pred_check_branch
        %291 = sbr.rel (%p289) target = $region36
      $region35: #{tpu_custom_call.1} parent=11 // pred_region
        _
      $region36: #{tpu_custom_call.1} parent=11 // pred_fallthru
        _
      // Predicated region
      $region37: #{tpu_custom_call.1} parent=11 // pred_check
        %p292 = pneg %p191
      $region38: #{tpu_custom_call.1} parent=11 // pred_check_branch
        %294 = sbr.rel (%p292) target = $region40
      $region39: #{tpu_custom_call.1} parent=11 // pred_region
        _
      $region40: #{tpu_custom_call.1} parent=11 // pred_fallthru
        _
      // Predicated region
      $region41: #{tpu_custom_call.1} parent=11 // pred_check
        %p295 = pneg %p212
      $region42: #{tpu_custom_call.1} parent=11 // pred_check_branch
        %297 = sbr.rel (%p295) target = $region44
      $region43: #{tpu_custom_call.1} parent=11 // pred_region
        _
      $region44: #{tpu_custom_call.1} parent=11 // pred_fallthru
        _
      // Predicated region
      $region45: #{tpu_custom_call.1} parent=11 // pred_check
        %p298 = pneg %p233
      $region46: #{tpu_custom_call.1} parent=11 // pred_check_branch
        %300 = sbr.rel (%p298) target = $region48
      $region47: #{tpu_custom_call.1} parent=11 // pred_region
        _
      $region48: #{tpu_custom_call.1} parent=11 // pred_fallthru
        _
    $region12: #{tpu_custom_call.1} parent=5 // pred_fallthru
      _
    %p301 = scmp.lt.s32.totalorder %s18, 2
    // Predicated region
    $region49: #{tpu_custom_call.1} parent=5 // pred_check
      %p302 = pneg %p301
    $region50: #{tpu_custom_call.1} parent=5 // pred_check_branch
      %304 = sbr.rel (%p302) target = $region52
    $region51: #{tpu_custom_call.1} parent=5 // pred_region
      // Predicated region
      $region53: #{tpu_custom_call.1} parent=51 // pred_check
        %p305 = pneg %p38
      $region54: #{tpu_custom_call.1} parent=51 // pred_check_branch
        %307 = sbr.rel (%p305) target = $region56
      $region55: #{tpu_custom_call.1} parent=51 // pred_region
        %s308 = smul.u32 32, %s18
        %p309 = scmp.lt.s32.totalorder %s308, 63
        %s310 = scalar_select %p309, %s308, 63
        %s311 = smul.addr %s310, 2
        %s312 = smul.addr %s311, 4
        %s313 = scalar_lea.vmem %s0, %s312
        %s314 = smul.u32 32, %s18
      $region56: #{tpu_custom_call.1} parent=51 // pred_fallthru
        _
    $region52: #{tpu_custom_call.1} parent=5 // pred_fallthru
      _
    %p315 = scmp.le.s32.totalorder 1, %s18
    %p316 = scmp.lt.s32.totalorder %s18, 3
    %p317 = pnand %p315, %p316
    %p318 = pneg %p317
    // Predicated region
    $region57: #{tpu_custom_call.1} parent=5 // pred_check
      _
    $region58: #{tpu_custom_call.1} parent=5 // pred_check_branch
      %320 = sbr.rel (%p317) target = $region60
    $region59: #{tpu_custom_call.1} parent=5 // pred_region
      %s321 = ssub.s32 %s18, 1
      %s322 = smul.u32 32, %s23
      %p323 = scmp.lt.s32.totalorder %s322, 63
      %s324 = scalar_select %p323, %s322, 63
      %s325 = smul.addr %s324, 2
      %s326 = smul.addr %s325, 4
      %s327 = scalar_lea.vmem %s0, %s326
      %p328 = pneg %p44
      %p329 = pneg %p41
      %p330 = pneg %p65
      %p331 = pneg %p62
      %p332 = pneg %p86
      %p333 = pneg %p83
      %p334 = pneg %p107
      %p335 = pneg %p104
      %p336 = pneg %p128
      %p337 = pneg %p125
      %p338 = pneg %p149
      %p339 = pneg %p146
      %p340 = pneg %p170
      %p341 = pneg %p167
      %p342 = pneg %p191
      %p343 = pneg %p188
      %p344 = pneg %p212
      %p345 = pneg %p209
      %p346 = pneg %p233
      %p347 = pneg %p230
      %p348 = pneg %p259
      %p349 = pneg %p256
      %s350 = smul.u32 32, %s23
      %p351 = scmp.lt.s32.totalorder %s350, 63
      %s352 = scalar_select %p351, %s350, 63
      %s353 = smul.addr %s352, 8
      %s354 = scalar_lea.vmem %s10, %s353
      %s355 = smul.u32 32, %s23
      %p356 = scmp.lt.s32.totalorder %s355, 63
      %s357 = scalar_select %p356, %s355, 63
      %s358 = smul.addr %s357, 2
      %s359 = smul.addr %s358, 4
      %s360 = scalar_lea.vmem %s0, %s359
      %s361 = smul.u32 32, %s23
      %s362 = smul.u32 32, %s23
      %p363 = scmp.lt.s32.totalorder %s362, 63
      %s364 = scalar_select %p363, %s362, 63
      %s365 = smul.addr %s364, 8
      %s366 = scalar_lea.vmem %s10, %s365
      %s367 = smul.u32 32, %s23
      %v369 = vld [vmem:[%s360] sm:$0xff]
      %v370 = vld [vmem:[%s360 + $0x8] sm:$0xff]
      %v371 = vld [vmem:[%s360 + $0x10] sm:$0xff]
      %v372 = vld [vmem:[%s360 + $0x18] sm:$0xff]
      %v373 = vld [vmem:[%s360 + $0x20] sm:$0xff]
      %v374 = vld [vmem:[%s360 + $0x28] sm:$0xff]
      %v375 = vld [vmem:[%s360 + $0x30] sm:$0xff]
      %v376 = vld [vmem:[%s360 + $0x38] sm:$0xff]
      %v377 = vld [vmem:[%s360 + $0x40] sm:$0xff]
      %v378 = vld [vmem:[%s360 + $0x48] sm:$0xff]
      %v379 = vld [vmem:[%s360 + $0x50] sm:$0xff]
      %v380 = vld [vmem:[%s360 + $0x58] sm:$0xff]
      %v381 = vld [vmem:[%s360 + $0x60] sm:$0xff]
      %v382 = vld [vmem:[%s360 + $0x68] sm:$0xff]
      %v383 = vld [vmem:[%s360 + $0x70] sm:$0xff]
      %v384 = vld [vmem:[%s360 + $0x78] sm:$0xff]
      %v385 = vld [vmem:[%s360 + $0x80] sm:$0xff]
      %v386 = vld [vmem:[%s360 + $0x88] sm:$0xff]
      %v387 = vld [vmem:[%s360 + $0x90] sm:$0xff]
      %v388 = vld [vmem:[%s360 + $0x98] sm:$0xff]
      %v389 = vld [vmem:[%s360 + $0xa0] sm:$0xff]
      %v390 = vld [vmem:[%s360 + $0xa8] sm:$0xff]
      %v391 = vld [vmem:[%s360 + $0xb0] sm:$0xff]
      %v392 = vld [vmem:[%s360 + $0xb8] sm:$0xff]
      %v393 = vld [vmem:[%s360 + $0xc0] sm:$0xff]
      %v394 = vld [vmem:[%s360 + $0xc8] sm:$0xff]
      %v395 = vld [vmem:[%s360 + $0xd0] sm:$0xff]
      %v396 = vld [vmem:[%s360 + $0xd8] sm:$0xff]
      %v397 = vld [vmem:[%s360 + $0xe0] sm:$0xff]
      %v398 = vld [vmem:[%s360 + $0xe8] sm:$0xff]
      %v399 = vld [vmem:[%s360 + $0xf0] sm:$0xff]
      %v400 = vld [vmem:[%s360 + $0xf8] sm:$0xff]
      %v401 = vld [vmem:[%s1] sm:$0xff]
      %v402 = vld [vmem:[%s1 + $0x8] sm:$0xff]
      %v403 = vld [vmem:[%s1 + $0x10] sm:$0xff]
      %v404 = vld [vmem:[%s1 + $0x18] sm:$0xff]
      %v405 = vld [vmem:[%s1 + $0x20] sm:$0xff]
      %v406 = vld [vmem:[%s1 + $0x28] sm:$0xff]
      %v407 = vld [vmem:[%s1 + $0x30] sm:$0xff]
      %v408 = vld [vmem:[%s1 + $0x38] sm:$0xff]
      %v409 = vld [vmem:[%s1 + $0x40] sm:$0xff]
      %v410 = vld [vmem:[%s1 + $0x48] sm:$0xff]
      %v411 = vld [vmem:[%s1 + $0x50] sm:$0xff]
      %v412 = vld [vmem:[%s1 + $0x58] sm:$0xff]
      %v413 = vld [vmem:[%s1 + $0x60] sm:$0xff]
      %v414 = vld [vmem:[%s1 + $0x68] sm:$0xff]
      %v415 = vld [vmem:[%s1 + $0x70] sm:$0xff]
      %v416 = vld [vmem:[%s1 + $0x78] sm:$0xff]
      %v417 = vld [vmem:[%s1 + $0x80] sm:$0xff]
      %v418 = vld [vmem:[%s1 + $0x88] sm:$0xff]
      %v419 = vld [vmem:[%s1 + $0x90] sm:$0xff]
      %v420 = vld [vmem:[%s1 + $0x98] sm:$0xff]
      %v421 = vld [vmem:[%s1 + $0xa0] sm:$0xff]
      %v422 = vld [vmem:[%s1 + $0xa8] sm:$0xff]
      %v423 = vld [vmem:[%s1 + $0xb0] sm:$0xff]
      %v424 = vld [vmem:[%s1 + $0xb8] sm:$0xff]
      %v425 = vld [vmem:[%s1 + $0xc0] sm:$0xff]
      %v426 = vld [vmem:[%s1 + $0xc8] sm:$0xff]
      %v427 = vld [vmem:[%s1 + $0xd0] sm:$0xff]
      %v428 = vld [vmem:[%s1 + $0xd8] sm:$0xff]
      %v429 = vld [vmem:[%s1 + $0xe0] sm:$0xff]
      %v430 = vld [vmem:[%s1 + $0xe8] sm:$0xff]
      %v431 = vld [vmem:[%s1 + $0xf0] sm:$0xff]
      %v432 = vld [vmem:[%s1 + $0xf8] sm:$0xff]
      %v433 = vld [vmem:[%s1 + $0x100] sm:$0xff]
      %v434 = vld [vmem:[%s1 + $0x108] sm:$0xff]
      %v435 = vld [vmem:[%s1 + $0x110] sm:$0xff]
      %v436 = vld [vmem:[%s1 + $0x118] sm:$0xff]
      %v437 = vld [vmem:[%s1 + $0x120] sm:$0xff]
      %v438 = vld [vmem:[%s1 + $0x128] sm:$0xff]
      %v439 = vld [vmem:[%s1 + $0x130] sm:$0xff]
      %v440 = vld [vmem:[%s1 + $0x138] sm:$0xff]
      %v441 = vld [vmem:[%s1 + $0x140] sm:$0xff]
      %v442 = vld [vmem:[%s1 + $0x148] sm:$0xff]
      %v443 = vld [vmem:[%s1 + $0x150] sm:$0xff]
      %v444 = vld [vmem:[%s1 + $0x158] sm:$0xff]
      %v445 = vld [vmem:[%s1 + $0x160] sm:$0xff]
      %v446 = vld [vmem:[%s1 + $0x168] sm:$0xff]
      %v447 = vld [vmem:[%s1 + $0x170] sm:$0xff]
      %v448 = vld [vmem:[%s1 + $0x178] sm:$0xff]
      %v449 = vld [vmem:[%s2] sm:$0xf]
      %v451 = vlaneseq
      %v452 = vshrl.u32 %v451, 7
      %v453 = vsub.s32 0, %v452
      %v454 = vrot.slane %v449, %v453
      %v455 = vlaneseq
      %v456 = vshrl.u32 %v455, 7
      %v457 = vsub.s32 1, %v456
      %v458 = vrot.slane %v449, %v457
      %v459 = vlaneseq
      %v460 = vshrl.u32 %v459, 7
      %v461 = vsub.s32 2, %v460
      %v462 = vrot.slane %v449, %v461
      %v463 = vlaneseq
      %v464 = vshrl.u32 %v463, 7
      %v465 = vsub.s32 3, %v464
      %v466 = vrot.slane %v449, %v465
      %v503 = vunpack.c.l.b16 %v369
      %v504 = vunpack.c.h.b16 %v369
      %v505 = vunpack.c.l.b16 %v370
      %v506 = vunpack.c.h.b16 %v370
      %v507 = vunpack.c.l.b16 %v371
      %v508 = vunpack.c.h.b16 %v371
      %v509 = vunpack.c.l.b16 %v372
      %v510 = vunpack.c.h.b16 %v372
      %v511 = vunpack.c.l.b16 %v373
      %v512 = vunpack.c.h.b16 %v373
      %v513 = vunpack.c.l.b16 %v374
      %v514 = vunpack.c.h.b16 %v374
      %v515 = vunpack.c.l.b16 %v375
      %v516 = vunpack.c.h.b16 %v375
      %v517 = vunpack.c.l.b16 %v376
      %v518 = vunpack.c.h.b16 %v376
      %v519 = vunpack.c.l.b16 %v377
      %v520 = vunpack.c.h.b16 %v377
      %v521 = vunpack.c.l.b16 %v378
      %v522 = vunpack.c.h.b16 %v378
      %v523 = vunpack.c.l.b16 %v379
      %v524 = vunpack.c.h.b16 %v379
      %v525 = vunpack.c.l.b16 %v380
      %v526 = vunpack.c.h.b16 %v380
      %v527 = vunpack.c.l.b16 %v381
      %v528 = vunpack.c.h.b16 %v381
      %v529 = vunpack.c.l.b16 %v382
      %v530 = vunpack.c.h.b16 %v382
      %v531 = vunpack.c.l.b16 %v383
      %v532 = vunpack.c.h.b16 %v383
      %v533 = vunpack.c.l.b16 %v384
      %v534 = vunpack.c.h.b16 %v384
      %v535 = vunpack.c.l.b16 %v385
      %v536 = vunpack.c.h.b16 %v385
      %v537 = vunpack.c.l.b16 %v386
      %v538 = vunpack.c.h.b16 %v386
      %v539 = vunpack.c.l.b16 %v387
      %v540 = vunpack.c.h.b16 %v387
      %v541 = vunpack.c.l.b16 %v388
      %v542 = vunpack.c.h.b16 %v388
      %v543 = vunpack.c.l.b16 %v389
      %v544 = vunpack.c.h.b16 %v389
      %v545 = vunpack.c.l.b16 %v390
      %v546 = vunpack.c.h.b16 %v390
      %v547 = vunpack.c.l.b16 %v391
      %v548 = vunpack.c.h.b16 %v391
      %v549 = vunpack.c.l.b16 %v392
      %v550 = vunpack.c.h.b16 %v392
      %v551 = vunpack.c.l.b16 %v393
      %v552 = vunpack.c.h.b16 %v393
      %v553 = vunpack.c.l.b16 %v394
      %v554 = vunpack.c.h.b16 %v394
      %v555 = vunpack.c.l.b16 %v395
      %v556 = vunpack.c.h.b16 %v395
      %v557 = vunpack.c.l.b16 %v396
      %v558 = vunpack.c.h.b16 %v396
      %v559 = vunpack.c.l.b16 %v397
      %v560 = vunpack.c.h.b16 %v397
      %v561 = vunpack.c.l.b16 %v398
      %v562 = vunpack.c.h.b16 %v398
      %v563 = vunpack.c.l.b16 %v399
      %v564 = vunpack.c.h.b16 %v399
      %v565 = vunpack.c.l.b16 %v400
      %v566 = vunpack.c.h.b16 %v400
      %v567 = vpack.c.b16 %v505, %v503
      %v568 = vpack.c.b16 %v506, %v504
      %v569 = vpack.c.b16 %v509, %v507
      %v570 = vpack.c.b16 %v510, %v508
      %v571 = vpack.c.b16 %v513, %v511
      %v572 = vpack.c.b16 %v514, %v512
      %v573 = vpack.c.b16 %v517, %v515
      %v574 = vpack.c.b16 %v518, %v516
      %v575 = vpack.c.b16 %v521, %v519
      %v576 = vpack.c.b16 %v522, %v520
      %v577 = vpack.c.b16 %v525, %v523
      %v578 = vpack.c.b16 %v526, %v524
      %v579 = vpack.c.b16 %v529, %v527
      %v580 = vpack.c.b16 %v530, %v528
      %v581 = vpack.c.b16 %v533, %v531
      %v582 = vpack.c.b16 %v534, %v532
      %v583 = vpack.c.b16 %v537, %v535
      %v584 = vpack.c.b16 %v538, %v536
      %v585 = vpack.c.b16 %v541, %v539
      %v586 = vpack.c.b16 %v542, %v540
      %v587 = vpack.c.b16 %v545, %v543
      %v588 = vpack.c.b16 %v546, %v544
      %v589 = vpack.c.b16 %v549, %v547
      %v590 = vpack.c.b16 %v550, %v548
      %v591 = vpack.c.b16 %v553, %v551
      %v592 = vpack.c.b16 %v554, %v552
      %v593 = vpack.c.b16 %v557, %v555
      %v594 = vpack.c.b16 %v558, %v556
      %v595 = vpack.c.b16 %v561, %v559
      %v596 = vpack.c.b16 %v562, %v560
      %v597 = vpack.c.b16 %v565, %v563
      %v598 = vpack.c.b16 %v566, %v564
      %v663 = vunpack.c.l.b16 %v401
      %v664 = vunpack.c.h.b16 %v401
      %v665 = vunpack.c.l.b16 %v402
      %v666 = vunpack.c.h.b16 %v402
      %v667 = vunpack.c.l.b16 %v403
      %v668 = vunpack.c.h.b16 %v403
      %v669 = vunpack.c.l.b16 %v404
      %v670 = vunpack.c.h.b16 %v404
      %v671 = vunpack.c.l.b16 %v405
      %v672 = vunpack.c.h.b16 %v405
      %v673 = vunpack.c.l.b16 %v406
      %v674 = vunpack.c.h.b16 %v406
      %v675 = vunpack.c.l.b16 %v407
      %v676 = vunpack.c.h.b16 %v407
      %v677 = vunpack.c.l.b16 %v408
      %v678 = vunpack.c.h.b16 %v408
      %v679 = vunpack.c.l.b16 %v409
      %v680 = vunpack.c.h.b16 %v409
      %v681 = vunpack.c.l.b16 %v410
      %v682 = vunpack.c.h.b16 %v410
      %v683 = vunpack.c.l.b16 %v411
      %v684 = vunpack.c.h.b16 %v411
      %v685 = vunpack.c.l.b16 %v412
      %v686 = vunpack.c.h.b16 %v412
      %v687 = vunpack.c.l.b16 %v413
      %v688 = vunpack.c.h.b16 %v413
      %v689 = vunpack.c.l.b16 %v414
      %v690 = vunpack.c.h.b16 %v414
      %v691 = vunpack.c.l.b16 %v415
      %v692 = vunpack.c.h.b16 %v415
      %v693 = vunpack.c.l.b16 %v416
      %v694 = vunpack.c.h.b16 %v416
      %v695 = vunpack.c.l.b16 %v417
      %v696 = vunpack.c.h.b16 %v417
      %v697 = vunpack.c.l.b16 %v418
      %v698 = vunpack.c.h.b16 %v418
      %v699 = vunpack.c.l.b16 %v419
      %v700 = vunpack.c.h.b16 %v419
      %v701 = vunpack.c.l.b16 %v420
      %v702 = vunpack.c.h.b16 %v420
      %v703 = vunpack.c.l.b16 %v421
      %v704 = vunpack.c.h.b16 %v421
      %v705 = vunpack.c.l.b16 %v422
      %v706 = vunpack.c.h.b16 %v422
      %v707 = vunpack.c.l.b16 %v423
      %v708 = vunpack.c.h.b16 %v423
      %v709 = vunpack.c.l.b16 %v424
      %v710 = vunpack.c.h.b16 %v424
      %v711 = vunpack.c.l.b16 %v425
      %v712 = vunpack.c.h.b16 %v425
      %v713 = vunpack.c.l.b16 %v426
      %v714 = vunpack.c.h.b16 %v426
      %v715 = vunpack.c.l.b16 %v427
      %v716 = vunpack.c.h.b16 %v427
      %v717 = vunpack.c.l.b16 %v428
      %v718 = vunpack.c.h.b16 %v428
      %v719 = vunpack.c.l.b16 %v429
      %v720 = vunpack.c.h.b16 %v429
      %v721 = vunpack.c.l.b16 %v430
      %v722 = vunpack.c.h.b16 %v430
      %v723 = vunpack.c.l.b16 %v431
      %v724 = vunpack.c.h.b16 %v431
      %v725 = vunpack.c.l.b16 %v432
      %v726 = vunpack.c.h.b16 %v432
      %v727 = vunpack.c.l.b16 %v433
      %v728 = vunpack.c.h.b16 %v433
      %v729 = vunpack.c.l.b16 %v434
      %v730 = vunpack.c.h.b16 %v434
      %v731 = vunpack.c.l.b16 %v435
      %v732 = vunpack.c.h.b16 %v435
      %v733 = vunpack.c.l.b16 %v436
      %v734 = vunpack.c.h.b16 %v436
      %v735 = vunpack.c.l.b16 %v437
      %v736 = vunpack.c.h.b16 %v437
      %v737 = vunpack.c.l.b16 %v438
      %v738 = vunpack.c.h.b16 %v438
      %v739 = vunpack.c.l.b16 %v439
      %v740 = vunpack.c.h.b16 %v439
      %v741 = vunpack.c.l.b16 %v440
      %v742 = vunpack.c.h.b16 %v440
      %v743 = vunpack.c.l.b16 %v441
      %v744 = vunpack.c.h.b16 %v441
      %v745 = vunpack.c.l.b16 %v442
      %v746 = vunpack.c.h.b16 %v442
      %v747 = vunpack.c.l.b16 %v443
      %v748 = vunpack.c.h.b16 %v443
      %v749 = vunpack.c.l.b16 %v444
      %v750 = vunpack.c.h.b16 %v444
      %v751 = vunpack.c.l.b16 %v445
      %v752 = vunpack.c.h.b16 %v445
      %v753 = vunpack.c.l.b16 %v446
      %v754 = vunpack.c.h.b16 %v446
      %v755 = vunpack.c.l.b16 %v447
      %v756 = vunpack.c.h.b16 %v447
      %v757 = vunpack.c.l.b16 %v448
      %v758 = vunpack.c.h.b16 %v448
      %v759 = vpack.c.b16 %v667, %v663
      %v760 = vpack.c.b16 %v668, %v664
      %v761 = vpack.c.b16 %v669, %v665
      %v762 = vpack.c.b16 %v670, %v666
      %v763 = vpack.c.b16 %v675, %v671
      %v764 = vpack.c.b16 %v676, %v672
      %v765 = vpack.c.b16 %v677, %v673
      %v766 = vpack.c.b16 %v678, %v674
      %v767 = vpack.c.b16 %v683, %v679
      %v768 = vpack.c.b16 %v684, %v680
      %v769 = vpack.c.b16 %v685, %v681
      %v770 = vpack.c.b16 %v686, %v682
      %v771 = vpack.c.b16 %v691, %v687
      %v772 = vpack.c.b16 %v692, %v688
      %v773 = vpack.c.b16 %v693, %v689
      %v774 = vpack.c.b16 %v694, %v690
      %v775 = vpack.c.b16 %v699, %v695
      %v776 = vpack.c.b16 %v700, %v696
      %v777 = vpack.c.b16 %v701, %v697
      %v778 = vpack.c.b16 %v702, %v698
      %v779 = vpack.c.b16 %v707, %v703
      %v780 = vpack.c.b16 %v708, %v704
      %v781 = vpack.c.b16 %v709, %v705
      %v782 = vpack.c.b16 %v710, %v706
      %v783 = vpack.c.b16 %v715, %v711
      %v784 = vpack.c.b16 %v716, %v712
      %v785 = vpack.c.b16 %v717, %v713
      %v786 = vpack.c.b16 %v718, %v714
      %v787 = vpack.c.b16 %v723, %v719
      %v788 = vpack.c.b16 %v724, %v720
      %v789 = vpack.c.b16 %v725, %v721
      %v790 = vpack.c.b16 %v726, %v722
      %v791 = vpack.c.b16 %v731, %v727
      %v792 = vpack.c.b16 %v732, %v728
      %v793 = vpack.c.b16 %v733, %v729
      %v794 = vpack.c.b16 %v734, %v730
      %v795 = vpack.c.b16 %v739, %v735
      %v796 = vpack.c.b16 %v740, %v736
      %v797 = vpack.c.b16 %v741, %v737
      %v798 = vpack.c.b16 %v742, %v738
      %v799 = vpack.c.b16 %v747, %v743
      %v800 = vpack.c.b16 %v748, %v744
      %v801 = vpack.c.b16 %v749, %v745
      %v802 = vpack.c.b16 %v750, %v746
      %v803 = vpack.c.b16 %v755, %v751
      %v804 = vpack.c.b16 %v756, %v752
      %v805 = vpack.c.b16 %v757, %v753
      %v806 = vpack.c.b16 %v758, %v754
      %vm855 = vcmask 523264
      %v857 = vsel %vm855, %v568, 0
      %v860 = vsel %vm855, %v570, 0
      %v863 = vsel %vm855, %v572, 0
      %v866 = vsel %vm855, %v574, 0
      %v869 = vsel %vm855, %v576, 0
      %v872 = vsel %vm855, %v578, 0
      %v875 = vsel %vm855, %v580, 0
      %v878 = vsel %vm855, %v582, 0
      %v881 = vsel %vm855, %v584, 0
      %v884 = vsel %vm855, %v586, 0
      %v887 = vsel %vm855, %v588, 0
      %v890 = vsel %vm855, %v590, 0
      %v893 = vsel %vm855, %v592, 0
      %v896 = vsel %vm855, %v594, 0
      %v899 = vsel %vm855, %v596, 0
      %v902 = vsel %vm855, %v598, 0
      %904 = vmatprep.subr.bf16.mxu0 %v760
      %905 = vmatpush1.bf16.msra.mxu0 %v759
      %906 = vmatprep.subr.bf16.mxu0 %v764
      %907 = vmatpush1.bf16.msra.mxu0 %v763
      %908 = vmatprep.subr.bf16.mxu0 %v768
      %909 = vmatpush1.bf16.msra.mxu0 %v767
      %910 = vmatprep.subr.bf16.mxu0 %v772
      %911 = vmatpush1.bf16.msra.mxu0 %v771
      %912 = vmatprep.subr.bf16.mxu0 %v776
      %913 = vmatpush1.bf16.msra.mxu0 %v775
      %914 = vmatprep.subr.bf16.mxu0 %v780
      %915 = vmatpush1.bf16.msra.mxu0 %v779
      %916 = vmatprep.subr.bf16.mxu0 %v784
      %917 = vmatpush1.bf16.msra.mxu0 %v783
      %918 = vmatprep.subr.bf16.mxu0 %v788
      %919 = vmatpush1.bf16.msra.mxu0 %v787
      %920 = vmatprep.subr.bf16.mxu0 %v792
      %921 = vmatpush1.bf16.msra.mxu0 %v791
      %922 = vmatprep.subr.bf16.mxu0 %v796
      %923 = vmatpush1.bf16.msra.mxu0 %v795
      %924 = vmatprep.subr.bf16.mxu0 %v800
      %925 = vmatpush1.bf16.msra.mxu0 %v799
      %926 = vmatprep.subr.bf16.mxu0 %v804
      %927 = vmatpush1.bf16.msra.mxu0 %v803
      %928 = vmatprep.subr.bf16.mxu0 0
      %929 = vmatpush1.bf16.msra.mxu0 0
      %930 = vmatprep.subr.bf16.mxu0 0
      %931 = vmatpush1.bf16.msra.mxu0 0
      %932 = vmatprep.subr.bf16.mxu0 0
      %933 = vmatpush1.bf16.msra.mxu0 0
      %934 = vmatprep.subr.bf16.mxu0 0
      %935 = vmatpush1.bf16.msra.mxu0 0
      %936 = vmatprep.mubr.bf16.mxu0 %v857
      %937 = vmatmul.mubr.bf16.gmra.mrb[0].mxu0 %v567
      %v938 = vpop.f32.mrb[0].mxu0
      %v939 = vadd.f32 %v454, %v938
      %v940 = vpop.f32.mrb[0].mxu0
      %v941 = vadd.f32 %v458, %v940
      %v942 = vpop.f32.mrb[0].mxu0
      %v943 = vadd.f32 %v454, %v942
      %v944 = vpop.f32.mrb[0].mxu0
      %v945 = vadd.f32 %v458, %v944
      %946 = vmatprep.mubr.bf16.mxu0 %v860
      %947 = vmatmul.mubr.bf16.gmra.mrb[0].mxu0 %v569
      %v948 = vpop.f32.mrb[0].mxu0
      %v949 = vadd.f32 %v454, %v948
      %v950 = vpop.f32.mrb[0].mxu0
      %v951 = vadd.f32 %v458, %v950
      %v952 = vpop.f32.mrb[0].mxu0
      %v953 = vadd.f32 %v454, %v952
      %v954 = vpop.f32.mrb[0].mxu0
      %v955 = vadd.f32 %v458, %v954
      %956 = vmatprep.mubr.bf16.mxu0 %v863
      %957 = vmatmul.mubr.bf16.gmra.mrb[0].mxu0 %v571
      %v958 = vpop.f32.mrb[0].mxu0
      %v959 = vadd.f32 %v454, %v958
      %v960 = vpop.f32.mrb[0].mxu0
      %v961 = vadd.f32 %v458, %v960
      %v962 = vpop.f32.mrb[0].mxu0
      %v963 = vadd.f32 %v454, %v962
      %v964 = vpop.f32.mrb[0].mxu0
      %v965 = vadd.f32 %v458, %v964
      %966 = vmatprep.mubr.bf16.mxu0 %v866
      %967 = vmatmul.mubr.bf16.gmra.mrb[0].mxu0 %v573
      %v968 = vpop.f32.mrb[0].mxu0
      %v969 = vadd.f32 %v454, %v968
      %v970 = vpop.f32.mrb[0].mxu0
      %v971 = vadd.f32 %v458, %v970
      %v972 = vpop.f32.mrb[0].mxu0
      %v973 = vadd.f32 %v454, %v972
      %v974 = vpop.f32.mrb[0].mxu0
      %v975 = vadd.f32 %v458, %v974
      %976 = vmatprep.mubr.bf16.mxu0 %v869
      %977 = vmatmul.mubr.bf16.gmra.mrb[0].mxu0 %v575
      %v978 = vpop.f32.mrb[0].mxu0
      %v979 = vadd.f32 %v454, %v978
      %v980 = vpop.f32.mrb[0].mxu0
      %v981 = vadd.f32 %v458, %v980
      %v982 = vpop.f32.mrb[0].mxu0
      %v983 = vadd.f32 %v454, %v982
      %v984 = vpop.f32.mrb[0].mxu0
      %v985 = vadd.f32 %v458, %v984
      %986 = vmatprep.mubr.bf16.mxu0 %v872
      %987 = vmatmul.mubr.bf16.gmra.mrb[0].mxu0 %v577
      %v988 = vpop.f32.mrb[0].mxu0
      %v989 = vadd.f32 %v454, %v988
      %v990 = vpop.f32.mrb[0].mxu0
      %v991 = vadd.f32 %v458, %v990
      %v992 = vpop.f32.mrb[0].mxu0
      %v993 = vadd.f32 %v454, %v992
      %v994 = vpop.f32.mrb[0].mxu0
      %v995 = vadd.f32 %v458, %v994
      %996 = vmatprep.mubr.bf16.mxu0 %v875
      %997 = vmatmul.mubr.bf16.gmra.mrb[0].mxu0 %v579
      %v998 = vpop.f32.mrb[0].mxu0
      %v999 = vadd.f32 %v454, %v998
      %v1000 = vpop.f32.mrb[0].mxu0
      %v1001 = vadd.f32 %v458, %v1000
      %v1002 = vpop.f32.mrb[0].mxu0
      %v1003 = vadd.f32 %v454, %v1002
      %v1004 = vpop.f32.mrb[0].mxu0
      %v1005 = vadd.f32 %v458, %v1004
      %1006 = vmatprep.mubr.bf16.mxu0 %v878
      %1007 = vmatmul.mubr.bf16.gmra.mrb[0].mxu0 %v581
      %v1008 = vpop.f32.mrb[0].mxu0
      %v1009 = vadd.f32 %v454, %v1008
      %v1010 = vpop.f32.mrb[0].mxu0
      %v1011 = vadd.f32 %v458, %v1010
      %v1012 = vpop.f32.mrb[0].mxu0
      %v1013 = vadd.f32 %v454, %v1012
      %v1014 = vpop.f32.mrb[0].mxu0
      %v1015 = vadd.f32 %v458, %v1014
      %1016 = vmatprep.mubr.bf16.mxu0 %v881
      %1017 = vmatmul.mubr.bf16.gmra.mrb[0].mxu0 %v583
      %v1018 = vpop.f32.mrb[0].mxu0
      %v1019 = vadd.f32 %v454, %v1018
      %v1020 = vpop.f32.mrb[0].mxu0
      %v1021 = vadd.f32 %v458, %v1020
      %v1022 = vpop.f32.mrb[0].mxu0
      %v1023 = vadd.f32 %v454, %v1022
      %v1024 = vpop.f32.mrb[0].mxu0
      %v1025 = vadd.f32 %v458, %v1024
      %1026 = vmatprep.mubr.bf16.mxu0 %v884
      %1027 = vmatmul.mubr.bf16.gmra.mrb[0].mxu0 %v585
      %v1028 = vpop.f32.mrb[0].mxu0
      %v1029 = vadd.f32 %v454, %v1028
      %v1030 = vpop.f32.mrb[0].mxu0
      %v1031 = vadd.f32 %v458, %v1030
      %v1032 = vpop.f32.mrb[0].mxu0
      %v1033 = vadd.f32 %v454, %v1032
      %v1034 = vpop.f32.mrb[0].mxu0
      %v1035 = vadd.f32 %v458, %v1034
      %1036 = vmatprep.mubr.bf16.mxu0 %v887
      %1037 = vmatmul.mubr.bf16.gmra.mrb[0].mxu0 %v587
      %v1038 = vpop.f32.mrb[0].mxu0
      %v1039 = vadd.f32 %v454, %v1038
      %v1040 = vpop.f32.mrb[0].mxu0
      %v1041 = vadd.f32 %v458, %v1040
      %v1042 = vpop.f32.mrb[0].mxu0
      %v1043 = vadd.f32 %v454, %v1042
      %v1044 = vpop.f32.mrb[0].mxu0
      %v1045 = vadd.f32 %v458, %v1044
      %1046 = vmatprep.mubr.bf16.mxu0 %v890
      %1047 = vmatmul.mubr.bf16.gmra.mrb[0].mxu0 %v589
      %v1048 = vpop.f32.mrb[0].mxu0
      %v1049 = vadd.f32 %v454, %v1048
      %v1050 = vpop.f32.mrb[0].mxu0
      %v1051 = vadd.f32 %v458, %v1050
      %v1052 = vpop.f32.mrb[0].mxu0
      %v1053 = vadd.f32 %v454, %v1052
      %v1054 = vpop.f32.mrb[0].mxu0
      %v1055 = vadd.f32 %v458, %v1054
      %1056 = vmatprep.mubr.bf16.mxu0 %v893
      %1057 = vmatmul.mubr.bf16.gmra.mrb[0].mxu0 %v591
      %v1058 = vpop.f32.mrb[0].mxu0
      %v1059 = vadd.f32 %v454, %v1058
      %v1060 = vpop.f32.mrb[0].mxu0
      %v1061 = vadd.f32 %v458, %v1060
      %v1062 = vpop.f32.mrb[0].mxu0
      %v1063 = vadd.f32 %v454, %v1062
      %v1064 = vpop.f32.mrb[0].mxu0
      %v1065 = vadd.f32 %v458, %v1064
      %1066 = vmatprep.mubr.bf16.mxu0 %v896
      %1067 = vmatmul.mubr.bf16.gmra.mrb[0].mxu0 %v593
      %v1068 = vpop.f32.mrb[0].mxu0
      %v1069 = vadd.f32 %v454, %v1068
      %v1070 = vpop.f32.mrb[0].mxu0
      %v1071 = vadd.f32 %v458, %v1070
      %v1072 = vpop.f32.mrb[0].mxu0
      %v1073 = vadd.f32 %v454, %v1072
      %v1074 = vpop.f32.mrb[0].mxu0
      %v1075 = vadd.f32 %v458, %v1074
      %1076 = vmatprep.mubr.bf16.mxu0 %v899
      %1077 = vmatmul.mubr.bf16.gmra.mrb[0].mxu0 %v595
      %v1078 = vpop.f32.mrb[0].mxu0
      %v1079 = vadd.f32 %v454, %v1078
      %v1080 = vpop.f32.mrb[0].mxu0
      %v1081 = vadd.f32 %v458, %v1080
      %v1082 = vpop.f32.mrb[0].mxu0
      %v1083 = vadd.f32 %v454, %v1082
      %v1084 = vpop.f32.mrb[0].mxu0
      %v1085 = vadd.f32 %v458, %v1084
      %1086 = vmatprep.mubr.bf16.mxu0 %v902
      %1087 = vmatmul.mubr.bf16.gmra.mrb[0].mxu0 %v597
      %v1088 = vpop.f32.mrb[0].mxu0
      %v1089 = vadd.f32 %v454, %v1088
      %v1090 = vpop.f32.mrb[0].mxu0
      %v1091 = vadd.f32 %v458, %v1090
      %v1092 = vpop.f32.mrb[0].mxu0
      %v1093 = vadd.f32 %v454, %v1092
      %v1094 = vpop.f32.mrb[0].mxu0
      %v1095 = vadd.f32 %v458, %v1094
      %1096 = vdwg.mxu0
      %1097 = vmatprep.subr.bf16.mxu0 %v762
      %1098 = vmatpush1.bf16.msra.mxu0 %v761
      %1099 = vmatprep.subr.bf16.mxu0 %v766
      %1100 = vmatpush1.bf16.msra.mxu0 %v765
      %1101 = vmatprep.subr.bf16.mxu0 %v770
      %1102 = vmatpush1.bf16.msra.mxu0 %v769
      %1103 = vmatprep.subr.bf16.mxu0 %v774
      %1104 = vmatpush1.bf16.msra.mxu0 %v773
      %1105 = vmatprep.subr.bf16.mxu0 %v778
      %1106 = vmatpush1.bf16.msra.mxu0 %v777
      %1107 = vmatprep.subr.bf16.mxu0 %v782
      %1108 = vmatpush1.bf16.msra.mxu0 %v781
      %1109 = vmatprep.subr.bf16.mxu0 %v786
      %1110 = vmatpush1.bf16.msra.mxu0 %v785
      %1111 = vmatprep.subr.bf16.mxu0 %v790
      %1112 = vmatpush1.bf16.msra.mxu0 %v789
      %1113 = vmatprep.subr.bf16.mxu0 %v794
      %1114 = vmatpush1.bf16.msra.mxu0 %v793
      %1115 = vmatprep.subr.bf16.mxu0 %v798
      %1116 = vmatpush1.bf16.msra.mxu0 %v797
      %1117 = vmatprep.subr.bf16.mxu0 %v802
      %1118 = vmatpush1.bf16.msra.mxu0 %v801
      %1119 = vmatprep.subr.bf16.mxu0 %v806
      %1120 = vmatpush1.bf16.msra.mxu0 %v805
      %1121 = vmatprep.subr.bf16.mxu0 0
      %1122 = vmatpush1.bf16.msra.mxu0 0
      %1123 = vmatprep.subr.bf16.mxu0 0
      %1124 = vmatpush1.bf16.msra.mxu0 0
      %1125 = vmatprep.subr.bf16.mxu0 0
      %1126 = vmatpush1.bf16.msra.mxu0 0
      %1127 = vmatprep.subr.bf16.mxu0 0
      %1128 = vmatpush1.bf16.msra.mxu0 0
      %1129 = vmatprep.mubr.bf16.mxu0 %v857
      %1130 = vmatmul.mubr.bf16.gmra.mrb[0].mxu0 %v567
      %v1131 = vpop.f32.mrb[0].mxu0
      %v1132 = vadd.f32 %v462, %v1131
      %v1133 = vpop.f32.mrb[0].mxu0
      %v1134 = vadd.f32 %v466, %v1133
      %v1135 = vpop.f32.mrb[0].mxu0
      %v1136 = vadd.f32 %v462, %v1135
      %v1137 = vpop.f32.mrb[0].mxu0
      %v1138 = vadd.f32 %v466, %v1137
      %1139 = vmatprep.mubr.bf16.mxu0 %v860
      %1140 = vmatmul.mubr.bf16.gmra.mrb[0].mxu0 %v569
      %v1141 = vpop.f32.mrb[0].mxu0
      %v1142 = vadd.f32 %v462, %v1141
      %v1143 = vpop.f32.mrb[0].mxu0
      %v1144 = vadd.f32 %v466, %v1143
      %v1145 = vpop.f32.mrb[0].mxu0
      %v1146 = vadd.f32 %v462, %v1145
      %v1147 = vpop.f32.mrb[0].mxu0
      %v1148 = vadd.f32 %v466, %v1147
      %1149 = vmatprep.mubr.bf16.mxu0 %v863
      %1150 = vmatmul.mubr.bf16.gmra.mrb[0].mxu0 %v571
      %v1151 = vpop.f32.mrb[0].mxu0
      %v1152 = vadd.f32 %v462, %v1151
      %v1153 = vpop.f32.mrb[0].mxu0
      %v1154 = vadd.f32 %v466, %v1153
      %v1155 = vpop.f32.mrb[0].mxu0
      %v1156 = vadd.f32 %v462, %v1155
      %v1157 = vpop.f32.mrb[0].mxu0
      %v1158 = vadd.f32 %v466, %v1157
      %1159 = vmatprep.mubr.bf16.mxu0 %v866
      %1160 = vmatmul.mubr.bf16.gmra.mrb[0].mxu0 %v573
      %v1161 = vpop.f32.mrb[0].mxu0
      %v1162 = vadd.f32 %v462, %v1161
      %v1163 = vpop.f32.mrb[0].mxu0
      %v1164 = vadd.f32 %v466, %v1163
      %v1165 = vpop.f32.mrb[0].mxu0
      %v1166 = vadd.f32 %v462, %v1165
      %v1167 = vpop.f32.mrb[0].mxu0
      %v1168 = vadd.f32 %v466, %v1167
      %1169 = vmatprep.mubr.bf16.mxu0 %v869
      %1170 = vmatmul.mubr.bf16.gmra.mrb[0].mxu0 %v575
      %v1171 = vpop.f32.mrb[0].mxu0
      %v1172 = vadd.f32 %v462, %v1171
      %v1173 = vpop.f32.mrb[0].mxu0
      %v1174 = vadd.f32 %v466, %v1173
      %v1175 = vpop.f32.mrb[0].mxu0
      %v1176 = vadd.f32 %v462, %v1175
      %v1177 = vpop.f32.mrb[0].mxu0
      %v1178 = vadd.f32 %v466, %v1177
      %1179 = vmatprep.mubr.bf16.mxu0 %v872
      %1180 = vmatmul.mubr.bf16.gmra.mrb[0].mxu0 %v577
      %v1181 = vpop.f32.mrb[0].mxu0
      %v1182 = vadd.f32 %v462, %v1181
      %v1183 = vpop.f32.mrb[0].mxu0
      %v1184 = vadd.f32 %v466, %v1183
      %v1185 = vpop.f32.mrb[0].mxu0
      %v1186 = vadd.f32 %v462, %v1185
      %v1187 = vpop.f32.mrb[0].mxu0
      %v1188 = vadd.f32 %v466, %v1187
      %1189 = vmatprep.mubr.bf16.mxu0 %v875
      %1190 = vmatmul.mubr.bf16.gmra.mrb[0].mxu0 %v579
      %v1191 = vpop.f32.mrb[0].mxu0
      %v1192 = vadd.f32 %v462, %v1191
      %v1193 = vpop.f32.mrb[0].mxu0
      %v1194 = vadd.f32 %v466, %v1193
      %v1195 = vpop.f32.mrb[0].mxu0
      %v1196 = vadd.f32 %v462, %v1195
      %v1197 = vpop.f32.mrb[0].mxu0
      %v1198 = vadd.f32 %v466, %v1197
      %1199 = vmatprep.mubr.bf16.mxu0 %v878
      %1200 = vmatmul.mubr.bf16.gmra.mrb[0].mxu0 %v581
      %v1201 = vpop.f32.mrb[0].mxu0
      %v1202 = vadd.f32 %v462, %v1201
      %v1203 = vpop.f32.mrb[0].mxu0
      %v1204 = vadd.f32 %v466, %v1203
      %v1205 = vpop.f32.mrb[0].mxu0
      %v1206 = vadd.f32 %v462, %v1205
      %v1207 = vpop.f32.mrb[0].mxu0
      %v1208 = vadd.f32 %v466, %v1207
      %1209 = vmatprep.mubr.bf16.mxu0 %v881
      %1210 = vmatmul.mubr.bf16.gmra.mrb[0].mxu0 %v583
      %v1211 = vpop.f32.mrb[0].mxu0
      %v1212 = vadd.f32 %v462, %v1211
      %v1213 = vpop.f32.mrb[0].mxu0
      %v1214 = vadd.f32 %v466, %v1213
      %v1215 = vpop.f32.mrb[0].mxu0
      %v1216 = vadd.f32 %v462, %v1215
      %v1217 = vpop.f32.mrb[0].mxu0
      %v1218 = vadd.f32 %v466, %v1217
      %1219 = vmatprep.mubr.bf16.mxu0 %v884
      %1220 = vmatmul.mubr.bf16.gmra.mrb[0].mxu0 %v585
      %v1221 = vpop.f32.mrb[0].mxu0
      %v1222 = vadd.f32 %v462, %v1221
      %v1223 = vpop.f32.mrb[0].mxu0
      %v1224 = vadd.f32 %v466, %v1223
      %v1225 = vpop.f32.mrb[0].mxu0
      %v1226 = vadd.f32 %v462, %v1225
      %v1227 = vpop.f32.mrb[0].mxu0
      %v1228 = vadd.f32 %v466, %v1227
      %1229 = vmatprep.mubr.bf16.mxu0 %v887
      %1230 = vmatmul.mubr.bf16.gmra.mrb[0].mxu0 %v587
      %v1231 = vpop.f32.mrb[0].mxu0
      %v1232 = vadd.f32 %v462, %v1231
      %v1233 = vpop.f32.mrb[0].mxu0
      %v1234 = vadd.f32 %v466, %v1233
      %v1235 = vpop.f32.mrb[0].mxu0
      %v1236 = vadd.f32 %v462, %v1235
      %v1237 = vpop.f32.mrb[0].mxu0
      %v1238 = vadd.f32 %v466, %v1237
      %1239 = vmatprep.mubr.bf16.mxu0 %v890
      %1240 = vmatmul.mubr.bf16.gmra.mrb[0].mxu0 %v589
      %v1241 = vpop.f32.mrb[0].mxu0
      %v1242 = vadd.f32 %v462, %v1241
      %v1243 = vpop.f32.mrb[0].mxu0
      %v1244 = vadd.f32 %v466, %v1243
      %v1245 = vpop.f32.mrb[0].mxu0
      %v1246 = vadd.f32 %v462, %v1245
      %v1247 = vpop.f32.mrb[0].mxu0
      %v1248 = vadd.f32 %v466, %v1247
      %1249 = vmatprep.mubr.bf16.mxu0 %v893
      %1250 = vmatmul.mubr.bf16.gmra.mrb[0].mxu0 %v591
      %v1251 = vpop.f32.mrb[0].mxu0
      %v1252 = vadd.f32 %v462, %v1251
      %v1253 = vpop.f32.mrb[0].mxu0
      %v1254 = vadd.f32 %v466, %v1253
      %v1255 = vpop.f32.mrb[0].mxu0
      %v1256 = vadd.f32 %v462, %v1255
      %v1257 = vpop.f32.mrb[0].mxu0
      %v1258 = vadd.f32 %v466, %v1257
      %1259 = vmatprep.mubr.bf16.mxu0 %v896
      %1260 = vmatmul.mubr.bf16.gmra.mrb[0].mxu0 %v593
      %v1261 = vpop.f32.mrb[0].mxu0
      %v1262 = vadd.f32 %v462, %v1261
      %v1263 = vpop.f32.mrb[0].mxu0
      %v1264 = vadd.f32 %v466, %v1263
      %v1265 = vpop.f32.mrb[0].mxu0
      %v1266 = vadd.f32 %v462, %v1265
      %v1267 = vpop.f32.mrb[0].mxu0
      %v1268 = vadd.f32 %v466, %v1267
      %1269 = vmatprep.mubr.bf16.mxu0 %v899
      %1270 = vmatmul.mubr.bf16.gmra.mrb[0].mxu0 %v595
      %v1271 = vpop.f32.mrb[0].mxu0
      %v1272 = vadd.f32 %v462, %v1271
      %v1273 = vpop.f32.mrb[0].mxu0
      %v1274 = vadd.f32 %v466, %v1273
      %v1275 = vpop.f32.mrb[0].mxu0
      %v1276 = vadd.f32 %v462, %v1275
      %v1277 = vpop.f32.mrb[0].mxu0
      %v1278 = vadd.f32 %v466, %v1277
      %1279 = vmatprep.mubr.bf16.mxu0 %v902
      %1280 = vmatmul.mubr.bf16.gmra.mrb[0].mxu0 %v597
      %v1281 = vpop.f32.mrb[0].mxu0
      %v1282 = vadd.f32 %v462, %v1281
      %v1283 = vpop.f32.mrb[0].mxu0
      %v1284 = vadd.f32 %v466, %v1283
      %v1285 = vpop.f32.mrb[0].mxu0
      %v1286 = vadd.f32 %v462, %v1285
      %v1287 = vpop.f32.mrb[0].mxu0
      %v1288 = vadd.f32 %v466, %v1287
      %1289 = vdwg.mxu0
      %v1290 = vmax.f32 %v939, 0.0
      %v1291 = vmax.f32 %v941, 0.0
      %v1292 = vmax.f32 %v943, 0.0
      %v1293 = vmax.f32 %v945, 0.0
      %v1294 = vmax.f32 %v949, 0.0
      %v1295 = vmax.f32 %v951, 0.0
      %v1296 = vmax.f32 %v953, 0.0
      %v1297 = vmax.f32 %v955, 0.0
      %v1298 = vmax.f32 %v959, 0.0
      %v1299 = vmax.f32 %v961, 0.0
      %v1300 = vmax.f32 %v963, 0.0
      %v1301 = vmax.f32 %v965, 0.0
      %v1302 = vmax.f32 %v969, 0.0
      %v1303 = vmax.f32 %v971, 0.0
      %v1304 = vmax.f32 %v973, 0.0
      %v1305 = vmax.f32 %v975, 0.0
      %v1306 = vmax.f32 %v979, 0.0
      %v1307 = vmax.f32 %v981, 0.0
      %v1308 = vmax.f32 %v983, 0.0
      %v1309 = vmax.f32 %v985, 0.0
      %v1310 = vmax.f32 %v989, 0.0
      %v1311 = vmax.f32 %v991, 0.0
      %v1312 = vmax.f32 %v993, 0.0
      %v1313 = vmax.f32 %v995, 0.0
      %v1314 = vmax.f32 %v999, 0.0
      %v1315 = vmax.f32 %v1001, 0.0
      %v1316 = vmax.f32 %v1003, 0.0
      %v1317 = vmax.f32 %v1005, 0.0
      %v1318 = vmax.f32 %v1009, 0.0
      %v1319 = vmax.f32 %v1011, 0.0
      %v1320 = vmax.f32 %v1013, 0.0
      %v1321 = vmax.f32 %v1015, 0.0
      %v1322 = vmax.f32 %v1019, 0.0
      %v1323 = vmax.f32 %v1021, 0.0
      %v1324 = vmax.f32 %v1023, 0.0
      %v1325 = vmax.f32 %v1025, 0.0
      %v1326 = vmax.f32 %v1029, 0.0
      %v1327 = vmax.f32 %v1031, 0.0
      %v1328 = vmax.f32 %v1033, 0.0
      %v1329 = vmax.f32 %v1035, 0.0
      %v1330 = vmax.f32 %v1039, 0.0
      %v1331 = vmax.f32 %v1041, 0.0
      %v1332 = vmax.f32 %v1043, 0.0
      %v1333 = vmax.f32 %v1045, 0.0
      %v1334 = vmax.f32 %v1049, 0.0
      %v1335 = vmax.f32 %v1051, 0.0
      %v1336 = vmax.f32 %v1053, 0.0
      %v1337 = vmax.f32 %v1055, 0.0
      %v1338 = vmax.f32 %v1059, 0.0
      %v1339 = vmax.f32 %v1061, 0.0
      %v1340 = vmax.f32 %v1063, 0.0
      %v1341 = vmax.f32 %v1065, 0.0
      %v1342 = vmax.f32 %v1069, 0.0
      %v1343 = vmax.f32 %v1071, 0.0
      %v1344 = vmax.f32 %v1073, 0.0
      %v1345 = vmax.f32 %v1075, 0.0
      %v1346 = vmax.f32 %v1079, 0.0
      %v1347 = vmax.f32 %v1081, 0.0
      %v1348 = vmax.f32 %v1083, 0.0
      %v1349 = vmax.f32 %v1085, 0.0
      %v1350 = vmax.f32 %v1089, 0.0
      %v1351 = vmax.f32 %v1091, 0.0
      %v1352 = vmax.f32 %v1093, 0.0
      %v1353 = vmax.f32 %v1095, 0.0
      %v1354 = vpack.c.bf16 %v1292, %v1290
      %v1355 = vpack.c.bf16 %v1293, %v1291
      %v1356 = vpack.c.bf16 %v1296, %v1294
      %v1357 = vpack.c.bf16 %v1297, %v1295
      %v1358 = vpack.c.bf16 %v1300, %v1298
      %v1359 = vpack.c.bf16 %v1301, %v1299
      %v1360 = vpack.c.bf16 %v1304, %v1302
      %v1361 = vpack.c.bf16 %v1305, %v1303
      %v1362 = vpack.c.bf16 %v1308, %v1306
      %v1363 = vpack.c.bf16 %v1309, %v1307
      %v1364 = vpack.c.bf16 %v1312, %v1310
      %v1365 = vpack.c.bf16 %v1313, %v1311
      %v1366 = vpack.c.bf16 %v1316, %v1314
      %v1367 = vpack.c.bf16 %v1317, %v1315
      %v1368 = vpack.c.bf16 %v1320, %v1318
      %v1369 = vpack.c.bf16 %v1321, %v1319
      %v1370 = vpack.c.bf16 %v1324, %v1322
      %v1371 = vpack.c.bf16 %v1325, %v1323
      %v1372 = vpack.c.bf16 %v1328, %v1326
      %v1373 = vpack.c.bf16 %v1329, %v1327
      %v1374 = vpack.c.bf16 %v1332, %v1330
      %v1375 = vpack.c.bf16 %v1333, %v1331
      %v1376 = vpack.c.bf16 %v1336, %v1334
      %v1377 = vpack.c.bf16 %v1337, %v1335
      %v1378 = vpack.c.bf16 %v1340, %v1338
      %v1379 = vpack.c.bf16 %v1341, %v1339
      %v1380 = vpack.c.bf16 %v1344, %v1342
      %v1381 = vpack.c.bf16 %v1345, %v1343
      %v1382 = vpack.c.bf16 %v1348, %v1346
      %v1383 = vpack.c.bf16 %v1349, %v1347
      %v1384 = vpack.c.bf16 %v1352, %v1350
      %v1385 = vpack.c.bf16 %v1353, %v1351
      %v1386 = vld [vmem:[%s3] sm:$0xff]
      %v1387 = vld [vmem:[%s3 + $0x8] sm:$0xff]
      %v1388 = vld [vmem:[%s3 + $0x10] sm:$0xff]
      %v1389 = vld [vmem:[%s3 + $0x18] sm:$0xff]
      %v1390 = vld [vmem:[%s3 + $0x20] sm:$0xff]
      %v1391 = vld [vmem:[%s3 + $0x28] sm:$0xff]
      %v1392 = vld [vmem:[%s3 + $0x30] sm:$0xff]
      %v1393 = vld [vmem:[%s3 + $0x38] sm:$0xff]
      %v1394 = vld [vmem:[%s3 + $0x40] sm:$0xff]
      %v1395 = vld [vmem:[%s3 + $0x48] sm:$0xff]
      %v1396 = vld [vmem:[%s3 + $0x50] sm:$0xff]
      %v1397 = vld [vmem:[%s3 + $0x58] sm:$0xff]
      %v1398 = vld [vmem:[%s3 + $0x60] sm:$0xff]
      %v1399 = vld [vmem:[%s3 + $0x68] sm:$0xff]
      %v1400 = vld [vmem:[%s3 + $0x70] sm:$0xff]
      %v1401 = vld [vmem:[%s3 + $0x78] sm:$0xff]
      %v1402 = vld [vmem:[%s3 + $0x80] sm:$0xff]
      %v1403 = vld [vmem:[%s3 + $0x88] sm:$0xff]
      %v1404 = vld [vmem:[%s3 + $0x90] sm:$0xff]
      %v1405 = vld [vmem:[%s3 + $0x98] sm:$0xff]
      %v1406 = vld [vmem:[%s3 + $0xa0] sm:$0xff]
      %v1407 = vld [vmem:[%s3 + $0xa8] sm:$0xff]
      %v1408 = vld [vmem:[%s3 + $0xb0] sm:$0xff]
      %v1409 = vld [vmem:[%s3 + $0xb8] sm:$0xff]
      %v1410 = vld [vmem:[%s3 + $0xc0] sm:$0xff]
      %v1411 = vld [vmem:[%s3 + $0xc8] sm:$0xff]
      %v1412 = vld [vmem:[%s3 + $0xd0] sm:$0xff]
      %v1413 = vld [vmem:[%s3 + $0xd8] sm:$0xff]
      %v1414 = vld [vmem:[%s3 + $0xe0] sm:$0xff]
      %v1415 = vld [vmem:[%s3 + $0xe8] sm:$0xff]
      %v1416 = vld [vmem:[%s3 + $0xf0] sm:$0xff]
      %v1417 = vld [vmem:[%s3 + $0xf8] sm:$0xff]
      %v1418 = vld [vmem:[%s4] sm:$0x3]
      %v1420 = vlaneseq
      %v1421 = vshrl.u32 %v1420, 7
      %v1422 = vsub.s32 0, %v1421
      %v1423 = vrot.slane %v1418, %v1422
      %v1424 = vlaneseq
      %v1425 = vshrl.u32 %v1424, 7
      %v1426 = vsub.s32 1, %v1425
      %v1427 = vrot.slane %v1418, %v1426
      %v1462 = vunpack.c.l.b16 %v1386
      %v1463 = vunpack.c.h.b16 %v1386
      %v1464 = vunpack.c.l.b16 %v1387
      %v1465 = vunpack.c.h.b16 %v1387
      %v1466 = vunpack.c.l.b16 %v1388
      %v1467 = vunpack.c.h.b16 %v1388
      %v1468 = vunpack.c.l.b16 %v1389
      %v1469 = vunpack.c.h.b16 %v1389
      %v1470 = vunpack.c.l.b16 %v1390
      %v1471 = vunpack.c.h.b16 %v1390
      %v1472 = vunpack.c.l.b16 %v1391
      %v1473 = vunpack.c.h.b16 %v1391
      %v1474 = vunpack.c.l.b16 %v1392
      %v1475 = vunpack.c.h.b16 %v1392
      %v1476 = vunpack.c.l.b16 %v1393
      %v1477 = vunpack.c.h.b16 %v1393
      %v1478 = vunpack.c.l.b16 %v1394
      %v1479 = vunpack.c.h.b16 %v1394
      %v1480 = vunpack.c.l.b16 %v1395
      %v1481 = vunpack.c.h.b16 %v1395
      %v1482 = vunpack.c.l.b16 %v1396
      %v1483 = vunpack.c.h.b16 %v1396
      %v1484 = vunpack.c.l.b16 %v1397
      %v1485 = vunpack.c.h.b16 %v1397
      %v1486 = vunpack.c.l.b16 %v1398
      %v1487 = vunpack.c.h.b16 %v1398
      %v1488 = vunpack.c.l.b16 %v1399
      %v1489 = vunpack.c.h.b16 %v1399
      %v1490 = vunpack.c.l.b16 %v1400
      %v1491 = vunpack.c.h.b16 %v1400
      %v1492 = vunpack.c.l.b16 %v1401
      %v1493 = vunpack.c.h.b16 %v1401
      %v1494 = vunpack.c.l.b16 %v1402
      %v1495 = vunpack.c.h.b16 %v1402
      %v1496 = vunpack.c.l.b16 %v1403
      %v1497 = vunpack.c.h.b16 %v1403
      %v1498 = vunpack.c.l.b16 %v1404
      %v1499 = vunpack.c.h.b16 %v1404
      %v1500 = vunpack.c.l.b16 %v1405
      %v1501 = vunpack.c.h.b16 %v1405
      %v1502 = vunpack.c.l.b16 %v1406
      %v1503 = vunpack.c.h.b16 %v1406
      %v1504 = vunpack.c.l.b16 %v1407
      %v1505 = vunpack.c.h.b16 %v1407
      %v1506 = vunpack.c.l.b16 %v1408
      %v1507 = vunpack.c.h.b16 %v1408
      %v1508 = vunpack.c.l.b16 %v1409
      %v1509 = vunpack.c.h.b16 %v1409
      %v1510 = vunpack.c.l.b16 %v1410
      %v1511 = vunpack.c.h.b16 %v1410
      %v1512 = vunpack.c.l.b16 %v1411
      %v1513 = vunpack.c.h.b16 %v1411
      %v1514 = vunpack.c.l.b16 %v1412
      %v1515 = vunpack.c.h.b16 %v1412
      %v1516 = vunpack.c.l.b16 %v1413
      %v1517 = vunpack.c.h.b16 %v1413
      %v1518 = vunpack.c.l.b16 %v1414
      %v1519 = vunpack.c.h.b16 %v1414
      %v1520 = vunpack.c.l.b16 %v1415
      %v1521 = vunpack.c.h.b16 %v1415
      %v1522 = vunpack.c.l.b16 %v1416
      %v1523 = vunpack.c.h.b16 %v1416
      %v1524 = vunpack.c.l.b16 %v1417
      %v1525 = vunpack.c.h.b16 %v1417
      %v1526 = vpack.c.b16 %v1464, %v1462
      %v1527 = vpack.c.b16 %v1465, %v1463
      %v1528 = vpack.c.b16 %v1468, %v1466
      %v1529 = vpack.c.b16 %v1469, %v1467
      %v1530 = vpack.c.b16 %v1472, %v1470
      %v1531 = vpack.c.b16 %v1473, %v1471
      %v1532 = vpack.c.b16 %v1476, %v1474
      %v1533 = vpack.c.b16 %v1477, %v1475
      %v1534 = vpack.c.b16 %v1480, %v1478
      %v1535 = vpack.c.b16 %v1481, %v1479
      %v1536 = vpack.c.b16 %v1484, %v1482
      %v1537 = vpack.c.b16 %v1485, %v1483
      %v1538 = vpack.c.b16 %v1488, %v1486
      %v1539 = vpack.c.b16 %v1489, %v1487
      %v1540 = vpack.c.b16 %v1492, %v1490
      %v1541 = vpack.c.b16 %v1493, %v1491
      %v1542 = vpack.c.b16 %v1496, %v1494
      %v1543 = vpack.c.b16 %v1497, %v1495
      %v1544 = vpack.c.b16 %v1500, %v1498
      %v1545 = vpack.c.b16 %v1501, %v1499
      %v1546 = vpack.c.b16 %v1504, %v1502
      %v1547 = vpack.c.b16 %v1505, %v1503
      %v1548 = vpack.c.b16 %v1508, %v1506
      %v1549 = vpack.c.b16 %v1509, %v1507
      %v1550 = vpack.c.b16 %v1512, %v1510
      %v1551 = vpack.c.b16 %v1513, %v1511
      %v1552 = vpack.c.b16 %v1516, %v1514
      %v1553 = vpack.c.b16 %v1517, %v1515
      %v1554 = vpack.c.b16 %v1520, %v1518
      %v1555 = vpack.c.b16 %v1521, %v1519
      %v1556 = vpack.c.b16 %v1524, %v1522
      %v1557 = vpack.c.b16 %v1525, %v1523
      %1590 = vmatprep.subr.bf16.mxu0 %v1527
      %1591 = vmatpush1.bf16.msra.mxu0 %v1526
      %1592 = vmatprep.subr.bf16.mxu0 %v1529
      %1593 = vmatpush1.bf16.msra.mxu0 %v1528
      %1594 = vmatprep.subr.bf16.mxu0 %v1531
      %1595 = vmatpush1.bf16.msra.mxu0 %v1530
      %1596 = vmatprep.subr.bf16.mxu0 %v1533
      %1597 = vmatpush1.bf16.msra.mxu0 %v1532
      %1598 = vmatprep.subr.bf16.mxu0 %v1535
      %1599 = vmatpush1.bf16.msra.mxu0 %v1534
      %1600 = vmatprep.subr.bf16.mxu0 %v1537
      %1601 = vmatpush1.bf16.msra.mxu0 %v1536
      %1602 = vmatprep.subr.bf16.mxu0 %v1539
      %1603 = vmatpush1.bf16.msra.mxu0 %v1538
      %1604 = vmatprep.subr.bf16.mxu0 %v1541
      %1605 = vmatpush1.bf16.msra.mxu0 %v1540
      %1606 = vmatprep.subr.bf16.mxu0 %v1543
      %1607 = vmatpush1.bf16.msra.mxu0 %v1542
      %1608 = vmatprep.subr.bf16.mxu0 %v1545
      %1609 = vmatpush1.bf16.msra.mxu0 %v1544
      %1610 = vmatprep.subr.bf16.mxu0 %v1547
      %1611 = vmatpush1.bf16.msra.mxu0 %v1546
      %1612 = vmatprep.subr.bf16.mxu0 %v1549
      %1613 = vmatpush1.bf16.msra.mxu0 %v1548
      %1614 = vmatprep.subr.bf16.mxu0 %v1551
      %1615 = vmatpush1.bf16.msra.mxu0 %v1550
      %1616 = vmatprep.subr.bf16.mxu0 %v1553
      %1617 = vmatpush1.bf16.msra.mxu0 %v1552
      %1618 = vmatprep.subr.bf16.mxu0 %v1555
      %1619 = vmatpush1.bf16.msra.mxu0 %v1554
      %1620 = vmatprep.subr.bf16.mxu0 %v1557
      %1621 = vmatpush1.bf16.msra.mxu0 %v1556
      %1622 = vmatprep.mubr.bf16.mxu0 %v1355
      %1623 = vmatmul.mubr.bf16.gmra.mrb[0].mxu0 %v1354
      %v1624 = vpop.f32.mrb[0].mxu0
      %v1625 = vadd.f32 %v1423, %v1624
      %v1626 = vpop.f32.mrb[0].mxu0
      %v1627 = vadd.f32 %v1427, %v1626
      %v1628 = vpop.f32.mrb[0].mxu0
      %v1629 = vadd.f32 %v1423, %v1628
      %v1630 = vpop.f32.mrb[0].mxu0
      %v1631 = vadd.f32 %v1427, %v1630
      %1632 = vmatprep.mubr.bf16.mxu0 %v1357
      %1633 = vmatmul.mubr.bf16.gmra.mrb[0].mxu0 %v1356
      %v1634 = vpop.f32.mrb[0].mxu0
      %v1635 = vadd.f32 %v1423, %v1634
      %v1636 = vpop.f32.mrb[0].mxu0
      %v1637 = vadd.f32 %v1427, %v1636
      %v1638 = vpop.f32.mrb[0].mxu0
      %v1639 = vadd.f32 %v1423, %v1638
      %v1640 = vpop.f32.mrb[0].mxu0
      %v1641 = vadd.f32 %v1427, %v1640
      %1642 = vmatprep.mubr.bf16.mxu0 %v1359
      %1643 = vmatmul.mubr.bf16.gmra.mrb[0].mxu0 %v1358
      %v1644 = vpop.f32.mrb[0].mxu0
      %v1645 = vadd.f32 %v1423, %v1644
      %v1646 = vpop.f32.mrb[0].mxu0
      %v1647 = vadd.f32 %v1427, %v1646
      %v1648 = vpop.f32.mrb[0].mxu0
      %v1649 = vadd.f32 %v1423, %v1648
      %v1650 = vpop.f32.mrb[0].mxu0
      %v1651 = vadd.f32 %v1427, %v1650
      %1652 = vmatprep.mubr.bf16.mxu0 %v1361
      %1653 = vmatmul.mubr.bf16.gmra.mrb[0].mxu0 %v1360
      %v1654 = vpop.f32.mrb[0].mxu0
      %v1655 = vadd.f32 %v1423, %v1654
      %v1656 = vpop.f32.mrb[0].mxu0
      %v1657 = vadd.f32 %v1427, %v1656
      %v1658 = vpop.f32.mrb[0].mxu0
      %v1659 = vadd.f32 %v1423, %v1658
      %v1660 = vpop.f32.mrb[0].mxu0
      %v1661 = vadd.f32 %v1427, %v1660
      %1662 = vmatprep.mubr.bf16.mxu0 %v1363
      %1663 = vmatmul.mubr.bf16.gmra.mrb[0].mxu0 %v1362
      %v1664 = vpop.f32.mrb[0].mxu0
      %v1665 = vadd.f32 %v1423, %v1664
      %v1666 = vpop.f32.mrb[0].mxu0
      %v1667 = vadd.f32 %v1427, %v1666
      %v1668 = vpop.f32.mrb[0].mxu0
      %v1669 = vadd.f32 %v1423, %v1668
      %v1670 = vpop.f32.mrb[0].mxu0
      %v1671 = vadd.f32 %v1427, %v1670
      %1672 = vmatprep.mubr.bf16.mxu0 %v1365
      %1673 = vmatmul.mubr.bf16.gmra.mrb[0].mxu0 %v1364
      %v1674 = vpop.f32.mrb[0].mxu0
      %v1675 = vadd.f32 %v1423, %v1674
      %v1676 = vpop.f32.mrb[0].mxu0
      %v1677 = vadd.f32 %v1427, %v1676
      %v1678 = vpop.f32.mrb[0].mxu0
      %v1679 = vadd.f32 %v1423, %v1678
      %v1680 = vpop.f32.mrb[0].mxu0
      %v1681 = vadd.f32 %v1427, %v1680
      %1682 = vmatprep.mubr.bf16.mxu0 %v1367
      %1683 = vmatmul.mubr.bf16.gmra.mrb[0].mxu0 %v1366
      %v1684 = vpop.f32.mrb[0].mxu0
      %v1685 = vadd.f32 %v1423, %v1684
      %v1686 = vpop.f32.mrb[0].mxu0
      %v1687 = vadd.f32 %v1427, %v1686
      %v1688 = vpop.f32.mrb[0].mxu0
      %v1689 = vadd.f32 %v1423, %v1688
      %v1690 = vpop.f32.mrb[0].mxu0
      %v1691 = vadd.f32 %v1427, %v1690
      %1692 = vmatprep.mubr.bf16.mxu0 %v1369
      %1693 = vmatmul.mubr.bf16.gmra.mrb[0].mxu0 %v1368
      %v1694 = vpop.f32.mrb[0].mxu0
      %v1695 = vadd.f32 %v1423, %v1694
      %v1696 = vpop.f32.mrb[0].mxu0
      %v1697 = vadd.f32 %v1427, %v1696
      %v1698 = vpop.f32.mrb[0].mxu0
      %v1699 = vadd.f32 %v1423, %v1698
      %v1700 = vpop.f32.mrb[0].mxu0
      %v1701 = vadd.f32 %v1427, %v1700
      %1702 = vmatprep.mubr.bf16.mxu0 %v1371
      %1703 = vmatmul.mubr.bf16.gmra.mrb[0].mxu0 %v1370
      %v1704 = vpop.f32.mrb[0].mxu0
      %v1705 = vadd.f32 %v1423, %v1704
      %v1706 = vpop.f32.mrb[0].mxu0
      %v1707 = vadd.f32 %v1427, %v1706
      %v1708 = vpop.f32.mrb[0].mxu0
      %v1709 = vadd.f32 %v1423, %v1708
      %v1710 = vpop.f32.mrb[0].mxu0
      %v1711 = vadd.f32 %v1427, %v1710
      %1712 = vmatprep.mubr.bf16.mxu0 %v1373
      %1713 = vmatmul.mubr.bf16.gmra.mrb[0].mxu0 %v1372
      %v1714 = vpop.f32.mrb[0].mxu0
      %v1715 = vadd.f32 %v1423, %v1714
      %v1716 = vpop.f32.mrb[0].mxu0
      %v1717 = vadd.f32 %v1427, %v1716
      %v1718 = vpop.f32.mrb[0].mxu0
      %v1719 = vadd.f32 %v1423, %v1718
      %v1720 = vpop.f32.mrb[0].mxu0
      %v1721 = vadd.f32 %v1427, %v1720
      %1722 = vmatprep.mubr.bf16.mxu0 %v1375
      %1723 = vmatmul.mubr.bf16.gmra.mrb[0].mxu0 %v1374
      %v1724 = vpop.f32.mrb[0].mxu0
      %v1725 = vadd.f32 %v1423, %v1724
      %v1726 = vpop.f32.mrb[0].mxu0
      %v1727 = vadd.f32 %v1427, %v1726
      %v1728 = vpop.f32.mrb[0].mxu0
      %v1729 = vadd.f32 %v1423, %v1728
      %v1730 = vpop.f32.mrb[0].mxu0
      %v1731 = vadd.f32 %v1427, %v1730
      %1732 = vmatprep.mubr.bf16.mxu0 %v1377
      %1733 = vmatmul.mubr.bf16.gmra.mrb[0].mxu0 %v1376
      %v1734 = vpop.f32.mrb[0].mxu0
      %v1735 = vadd.f32 %v1423, %v1734
      %v1736 = vpop.f32.mrb[0].mxu0
      %v1737 = vadd.f32 %v1427, %v1736
      %v1738 = vpop.f32.mrb[0].mxu0
      %v1739 = vadd.f32 %v1423, %v1738
      %v1740 = vpop.f32.mrb[0].mxu0
      %v1741 = vadd.f32 %v1427, %v1740
      %1742 = vmatprep.mubr.bf16.mxu0 %v1379
      %1743 = vmatmul.mubr.bf16.gmra.mrb[0].mxu0 %v1378
      %v1744 = vpop.f32.mrb[0].mxu0
      %v1745 = vadd.f32 %v1423, %v1744
      %v1746 = vpop.f32.mrb[0].mxu0
      %v1747 = vadd.f32 %v1427, %v1746
      %v1748 = vpop.f32.mrb[0].mxu0
      %v1749 = vadd.f32 %v1423, %v1748
      %v1750 = vpop.f32.mrb[0].mxu0
      %v1751 = vadd.f32 %v1427, %v1750
      %1752 = vmatprep.mubr.bf16.mxu0 %v1381
      %1753 = vmatmul.mubr.bf16.gmra.mrb[0].mxu0 %v1380
      %v1754 = vpop.f32.mrb[0].mxu0
      %v1755 = vadd.f32 %v1423, %v1754
      %v1756 = vpop.f32.mrb[0].mxu0
      %v1757 = vadd.f32 %v1427, %v1756
      %v1758 = vpop.f32.mrb[0].mxu0
      %v1759 = vadd.f32 %v1423, %v1758
      %v1760 = vpop.f32.mrb[0].mxu0
      %v1761 = vadd.f32 %v1427, %v1760
      %1762 = vmatprep.mubr.bf16.mxu0 %v1383
      %1763 = vmatmul.mubr.bf16.gmra.mrb[0].mxu0 %v1382
      %v1764 = vpop.f32.mrb[0].mxu0
      %v1765 = vadd.f32 %v1423, %v1764
      %v1766 = vpop.f32.mrb[0].mxu0
      %v1767 = vadd.f32 %v1427, %v1766
      %v1768 = vpop.f32.mrb[0].mxu0
      %v1769 = vadd.f32 %v1423, %v1768
      %v1770 = vpop.f32.mrb[0].mxu0
      %v1771 = vadd.f32 %v1427, %v1770
      %1772 = vmatprep.mubr.bf16.mxu0 %v1385
      %1773 = vmatmul.mubr.bf16.gmra.mrb[0].mxu0 %v1384
      %v1774 = vpop.f32.mrb[0].mxu0
      %v1775 = vadd.f32 %v1423, %v1774
      %v1776 = vpop.f32.mrb[0].mxu0
      %v1777 = vadd.f32 %v1427, %v1776
      %v1778 = vpop.f32.mrb[0].mxu0
      %v1779 = vadd.f32 %v1423, %v1778
      %v1780 = vpop.f32.mrb[0].mxu0
      %v1781 = vadd.f32 %v1427, %v1780
      %1782 = vdwg.mxu0
      %v1783 = vmax.f32 %v1625, 0.0
      %v1784 = vmax.f32 %v1627, 0.0
      %v1785 = vmax.f32 %v1629, 0.0
      %v1786 = vmax.f32 %v1631, 0.0
      %v1787 = vmax.f32 %v1635, 0.0
      %v1788 = vmax.f32 %v1637, 0.0
      %v1789 = vmax.f32 %v1639, 0.0
      %v1790 = vmax.f32 %v1641, 0.0
      %v1791 = vmax.f32 %v1645, 0.0
      %v1792 = vmax.f32 %v1647, 0.0
      %v1793 = vmax.f32 %v1649, 0.0
      %v1794 = vmax.f32 %v1651, 0.0
      %v1795 = vmax.f32 %v1655, 0.0
      %v1796 = vmax.f32 %v1657, 0.0
      %v1797 = vmax.f32 %v1659, 0.0
      %v1798 = vmax.f32 %v1661, 0.0
      %v1799 = vmax.f32 %v1665, 0.0
      %v1800 = vmax.f32 %v1667, 0.0
      %v1801 = vmax.f32 %v1669, 0.0
      %v1802 = vmax.f32 %v1671, 0.0
      %v1803 = vmax.f32 %v1675, 0.0
      %v1804 = vmax.f32 %v1677, 0.0
      %v1805 = vmax.f32 %v1679, 0.0
      %v1806 = vmax.f32 %v1681, 0.0
      %v1807 = vmax.f32 %v1685, 0.0
      %v1808 = vmax.f32 %v1687, 0.0
      %v1809 = vmax.f32 %v1689, 0.0
      %v1810 = vmax.f32 %v1691, 0.0
      %v1811 = vmax.f32 %v1695, 0.0
      %v1812 = vmax.f32 %v1697, 0.0
      %v1813 = vmax.f32 %v1699, 0.0
      %v1814 = vmax.f32 %v1701, 0.0
      %v1815 = vmax.f32 %v1705, 0.0
      %v1816 = vmax.f32 %v1707, 0.0
      %v1817 = vmax.f32 %v1709, 0.0
      %v1818 = vmax.f32 %v1711, 0.0
      %v1819 = vmax.f32 %v1715, 0.0
      %v1820 = vmax.f32 %v1717, 0.0
      %v1821 = vmax.f32 %v1719, 0.0
      %v1822 = vmax.f32 %v1721, 0.0
      %v1823 = vmax.f32 %v1725, 0.0
      %v1824 = vmax.f32 %v1727, 0.0
      %v1825 = vmax.f32 %v1729, 0.0
      %v1826 = vmax.f32 %v1731, 0.0
      %v1827 = vmax.f32 %v1735, 0.0
      %v1828 = vmax.f32 %v1737, 0.0
      %v1829 = vmax.f32 %v1739, 0.0
      %v1830 = vmax.f32 %v1741, 0.0
      %v1831 = vmax.f32 %v1745, 0.0
      %v1832 = vmax.f32 %v1747, 0.0
      %v1833 = vmax.f32 %v1749, 0.0
      %v1834 = vmax.f32 %v1751, 0.0
      %v1835 = vmax.f32 %v1755, 0.0
      %v1836 = vmax.f32 %v1757, 0.0
      %v1837 = vmax.f32 %v1759, 0.0
      %v1838 = vmax.f32 %v1761, 0.0
      %v1839 = vmax.f32 %v1765, 0.0
      %v1840 = vmax.f32 %v1767, 0.0
      %v1841 = vmax.f32 %v1769, 0.0
      %v1842 = vmax.f32 %v1771, 0.0
      %v1843 = vmax.f32 %v1775, 0.0
      %v1844 = vmax.f32 %v1777, 0.0
      %v1845 = vmax.f32 %v1779, 0.0
      %v1846 = vmax.f32 %v1781, 0.0
      %v1847 = vld [vmem:[%s5] sm:$0x3]
      %v1849 = vlaneseq
      %v1850 = vshrl.u32 %v1849, 7
      %v1851 = vsub.s32 0, %v1850
      %v1852 = vrot.slane %v1847, %v1851
      %v1853 = vlaneseq
      %v1854 = vshrl.u32 %v1853, 7
      %v1855 = vsub.s32 1, %v1854
      %v1856 = vrot.slane %v1847, %v1855
      %v1859 = vmul.f32 %v1783, %v1852
      %v1860 = vmul.f32 %v1784, %v1856
      %v1861 = vmul.f32 %v1785, %v1852
      %v1862 = vmul.f32 %v1786, %v1856
      %v1863 = vmul.f32 %v1787, %v1852
      %v1864 = vmul.f32 %v1788, %v1856
      %v1865 = vmul.f32 %v1789, %v1852
      %v1866 = vmul.f32 %v1790, %v1856
      %v1867 = vmul.f32 %v1791, %v1852
      %v1868 = vmul.f32 %v1792, %v1856
      %v1869 = vmul.f32 %v1793, %v1852
      %v1870 = vmul.f32 %v1794, %v1856
      %v1871 = vmul.f32 %v1795, %v1852
      %v1872 = vmul.f32 %v1796, %v1856
      %v1873 = vmul.f32 %v1797, %v1852
      %v1874 = vmul.f32 %v1798, %v1856
      %v1875 = vmul.f32 %v1799, %v1852
      %v1876 = vmul.f32 %v1800, %v1856
      %v1877 = vmul.f32 %v1801, %v1852
      %v1878 = vmul.f32 %v1802, %v1856
      %v1879 = vmul.f32 %v1803, %v1852
      %v1880 = vmul.f32 %v1804, %v1856
      %v1881 = vmul.f32 %v1805, %v1852
      %v1882 = vmul.f32 %v1806, %v1856
      %v1883 = vmul.f32 %v1807, %v1852
      %v1884 = vmul.f32 %v1808, %v1856
      %v1885 = vmul.f32 %v1809, %v1852
      %v1886 = vmul.f32 %v1810, %v1856
      %v1887 = vmul.f32 %v1811, %v1852
      %v1888 = vmul.f32 %v1812, %v1856
      %v1889 = vmul.f32 %v1813, %v1852
      %v1890 = vmul.f32 %v1814, %v1856
      %v1891 = vmul.f32 %v1815, %v1852
      %v1892 = vmul.f32 %v1816, %v1856
      %v1893 = vmul.f32 %v1817, %v1852
      %v1894 = vmul.f32 %v1818, %v1856
      %v1895 = vmul.f32 %v1819, %v1852
      %v1896 = vmul.f32 %v1820, %v1856
      %v1897 = vmul.f32 %v1821, %v1852
      %v1898 = vmul.f32 %v1822, %v1856
      %v1899 = vmul.f32 %v1823, %v1852
      %v1900 = vmul.f32 %v1824, %v1856
      %v1901 = vmul.f32 %v1825, %v1852
      %v1902 = vmul.f32 %v1826, %v1856
      %v1903 = vmul.f32 %v1827, %v1852
      %v1904 = vmul.f32 %v1828, %v1856
      %v1905 = vmul.f32 %v1829, %v1852
      %v1906 = vmul.f32 %v1830, %v1856
      %v1907 = vmul.f32 %v1831, %v1852
      %v1908 = vmul.f32 %v1832, %v1856
      %v1909 = vmul.f32 %v1833, %v1852
      %v1910 = vmul.f32 %v1834, %v1856
      %v1911 = vmul.f32 %v1835, %v1852
      %v1912 = vmul.f32 %v1836, %v1856
      %v1913 = vmul.f32 %v1837, %v1852
      %v1914 = vmul.f32 %v1838, %v1856
      %v1915 = vmul.f32 %v1839, %v1852
      %v1916 = vmul.f32 %v1840, %v1856
      %v1917 = vmul.f32 %v1841, %v1852
      %v1918 = vmul.f32 %v1842, %v1856
      %v1919 = vmul.f32 %v1843, %v1852
      %v1920 = vmul.f32 %v1844, %v1856
      %v1921 = vmul.f32 %v1845, %v1852
      %v1922 = vmul.f32 %v1846, %v1856
      %v1923 = vadd.f32 %v1859, %v1860
      %1924 = vadd.xlane.f32.xlu0 %v1923
      %v1925 = vpop.xlane.xlu0 %1924
      %v1926 = vadd.f32 %v1861, %v1862
      %1927 = vadd.xlane.f32.xlu0 %v1926
      %v1928 = vpop.xlane.xlu0 %1927
      %v1929 = vadd.f32 %v1863, %v1864
      %1930 = vadd.xlane.f32.xlu0 %v1929
      %v1931 = vpop.xlane.xlu0 %1930
      %v1932 = vadd.f32 %v1865, %v1866
      %1933 = vadd.xlane.f32.xlu0 %v1932
      %v1934 = vpop.xlane.xlu0 %1933
      %v1935 = vadd.f32 %v1867, %v1868
      %1936 = vadd.xlane.f32.xlu0 %v1935
      %v1937 = vpop.xlane.xlu0 %1936
      %v1938 = vadd.f32 %v1869, %v1870
      %1939 = vadd.xlane.f32.xlu0 %v1938
      %v1940 = vpop.xlane.xlu0 %1939
      %v1941 = vadd.f32 %v1871, %v1872
      %1942 = vadd.xlane.f32.xlu0 %v1941
      %v1943 = vpop.xlane.xlu0 %1942
      %v1944 = vadd.f32 %v1873, %v1874
      %1945 = vadd.xlane.f32.xlu0 %v1944
      %v1946 = vpop.xlane.xlu0 %1945
      %v1947 = vadd.f32 %v1875, %v1876
      %1948 = vadd.xlane.f32.xlu0 %v1947
      %v1949 = vpop.xlane.xlu0 %1948
      %v1950 = vadd.f32 %v1877, %v1878
      %1951 = vadd.xlane.f32.xlu0 %v1950
      %v1952 = vpop.xlane.xlu0 %1951
      %v1953 = vadd.f32 %v1879, %v1880
      %1954 = vadd.xlane.f32.xlu0 %v1953
      %v1955 = vpop.xlane.xlu0 %1954
      %v1956 = vadd.f32 %v1881, %v1882
      %1957 = vadd.xlane.f32.xlu0 %v1956
      %v1958 = vpop.xlane.xlu0 %1957
      %v1959 = vadd.f32 %v1883, %v1884
      %1960 = vadd.xlane.f32.xlu0 %v1959
      %v1961 = vpop.xlane.xlu0 %1960
      %v1962 = vadd.f32 %v1885, %v1886
      %1963 = vadd.xlane.f32.xlu0 %v1962
      %v1964 = vpop.xlane.xlu0 %1963
      %v1965 = vadd.f32 %v1887, %v1888
      %1966 = vadd.xlane.f32.xlu0 %v1965
      %v1967 = vpop.xlane.xlu0 %1966
      %v1968 = vadd.f32 %v1889, %v1890
      %1969 = vadd.xlane.f32.xlu0 %v1968
      %v1970 = vpop.xlane.xlu0 %1969
      %v1971 = vadd.f32 %v1891, %v1892
      %1972 = vadd.xlane.f32.xlu0 %v1971
      %v1973 = vpop.xlane.xlu0 %1972
      %v1974 = vadd.f32 %v1893, %v1894
      %1975 = vadd.xlane.f32.xlu0 %v1974
      %v1976 = vpop.xlane.xlu0 %1975
      %v1977 = vadd.f32 %v1895, %v1896
      %1978 = vadd.xlane.f32.xlu0 %v1977
      %v1979 = vpop.xlane.xlu0 %1978
      %v1980 = vadd.f32 %v1897, %v1898
      %1981 = vadd.xlane.f32.xlu0 %v1980
      %v1982 = vpop.xlane.xlu0 %1981
      %v1983 = vadd.f32 %v1899, %v1900
      %1984 = vadd.xlane.f32.xlu0 %v1983
      %v1985 = vpop.xlane.xlu0 %1984
      %v1986 = vadd.f32 %v1901, %v1902
      %1987 = vadd.xlane.f32.xlu0 %v1986
      %v1988 = vpop.xlane.xlu0 %1987
      %v1989 = vadd.f32 %v1903, %v1904
      %1990 = vadd.xlane.f32.xlu0 %v1989
      %v1991 = vpop.xlane.xlu0 %1990
      %v1992 = vadd.f32 %v1905, %v1906
      %1993 = vadd.xlane.f32.xlu0 %v1992
      %v1994 = vpop.xlane.xlu0 %1993
      %v1995 = vadd.f32 %v1907, %v1908
      %1996 = vadd.xlane.f32.xlu0 %v1995
      %v1997 = vpop.xlane.xlu0 %1996
      %v1998 = vadd.f32 %v1909, %v1910
      %1999 = vadd.xlane.f32.xlu0 %v1998
      %v2000 = vpop.xlane.xlu0 %1999
      %v2001 = vadd.f32 %v1911, %v1912
      %2002 = vadd.xlane.f32.xlu0 %v2001
      %v2003 = vpop.xlane.xlu0 %2002
      %v2004 = vadd.f32 %v1913, %v1914
      %2005 = vadd.xlane.f32.xlu0 %v2004
      %v2006 = vpop.xlane.xlu0 %2005
      %v2007 = vadd.f32 %v1915, %v1916
      %2008 = vadd.xlane.f32.xlu0 %v2007
      %v2009 = vpop.xlane.xlu0 %2008
      %v2010 = vadd.f32 %v1917, %v1918
      %2011 = vadd.xlane.f32.xlu0 %v2010
      %v2012 = vpop.xlane.xlu0 %2011
      %v2013 = vadd.f32 %v1919, %v1920
      %2014 = vadd.xlane.f32.xlu0 %v2013
      %v2015 = vpop.xlane.xlu0 %2014
      %v2016 = vadd.f32 %v1921, %v1922
      %2017 = vadd.xlane.f32.xlu0 %v2016
      %v2018 = vpop.xlane.xlu0 %2017
      %v2019 = vld [vmem:[#allocation2] sm:$0x1]
      %v2021 = vlaneseq
      %v2022 = vshrl.u32 %v2021, 7
      %v2023 = vsub.s32 0, %v2022
      %v2024 = vrot.slane %v2019, %v2023
      %v2026 = vadd.f32 %v1925, %v2024
      %v2027 = vadd.f32 %v1928, %v2024
      %v2028 = vadd.f32 %v1931, %v2024
      %v2029 = vadd.f32 %v1934, %v2024
      %v2030 = vadd.f32 %v1937, %v2024
      %v2031 = vadd.f32 %v1940, %v2024
      %v2032 = vadd.f32 %v1943, %v2024
      %v2033 = vadd.f32 %v1946, %v2024
      %v2034 = vadd.f32 %v1949, %v2024
      %v2035 = vadd.f32 %v1952, %v2024
      %v2036 = vadd.f32 %v1955, %v2024
      %v2037 = vadd.f32 %v1958, %v2024
      %v2038 = vadd.f32 %v1961, %v2024
      %v2039 = vadd.f32 %v1964, %v2024
      %v2040 = vadd.f32 %v1967, %v2024
      %v2041 = vadd.f32 %v1970, %v2024
      %v2042 = vadd.f32 %v1973, %v2024
      %v2043 = vadd.f32 %v1976, %v2024
      %v2044 = vadd.f32 %v1979, %v2024
      %v2045 = vadd.f32 %v1982, %v2024
      %v2046 = vadd.f32 %v1985, %v2024
      %v2047 = vadd.f32 %v1988, %v2024
      %v2048 = vadd.f32 %v1991, %v2024
      %v2049 = vadd.f32 %v1994, %v2024
      %v2050 = vadd.f32 %v1997, %v2024
      %v2051 = vadd.f32 %v2000, %v2024
      %v2052 = vadd.f32 %v2003, %v2024
      %v2053 = vadd.f32 %v2006, %v2024
      %v2054 = vadd.f32 %v2009, %v2024
      %v2055 = vadd.f32 %v2012, %v2024
      %v2056 = vadd.f32 %v2015, %v2024
      %v2057 = vadd.f32 %v2018, %v2024
      %v2058 = vld [vmem:[%s7] sm:$0x3]
      %2060 = vset.pattern.permute.xlu0 0
      %2061 = vperm.xlu0 %2060, %v2026
      %v2062 = vpop.permute.xlu0 %2061
      %2065 = vset.pattern.permute.xlu0 0
      %2066 = vperm.xlu0 %2065, %v2027
      %v2067 = vpop.permute.xlu0 %2066
      %2070 = vset.pattern.permute.xlu0 0
      %2071 = vperm.xlu0 %2070, %v2028
      %v2072 = vpop.permute.xlu0 %2071
      %2075 = vset.pattern.permute.xlu0 0
      %2076 = vperm.xlu0 %2075, %v2029
      %v2077 = vpop.permute.xlu0 %2076
      %2080 = vset.pattern.permute.xlu0 0
      %2081 = vperm.xlu0 %2080, %v2030
      %v2082 = vpop.permute.xlu0 %2081
      %2085 = vset.pattern.permute.xlu0 0
      %2086 = vperm.xlu0 %2085, %v2031
      %v2087 = vpop.permute.xlu0 %2086
      %2090 = vset.pattern.permute.xlu0 0
      %2091 = vperm.xlu0 %2090, %v2032
      %v2092 = vpop.permute.xlu0 %2091
      %2095 = vset.pattern.permute.xlu0 0
      %2096 = vperm.xlu0 %2095, %v2033
      %v2097 = vpop.permute.xlu0 %2096
      %2100 = vset.pattern.permute.xlu0 0
      %2101 = vperm.xlu0 %2100, %v2034
      %v2102 = vpop.permute.xlu0 %2101
      %2105 = vset.pattern.permute.xlu0 0
      %2106 = vperm.xlu0 %2105, %v2035
      %v2107 = vpop.permute.xlu0 %2106
      %2110 = vset.pattern.permute.xlu0 0
      %2111 = vperm.xlu0 %2110, %v2036
      %v2112 = vpop.permute.xlu0 %2111
      %2115 = vset.pattern.permute.xlu0 0
      %2116 = vperm.xlu0 %2115, %v2037
      %v2117 = vpop.permute.xlu0 %2116
      %2120 = vset.pattern.permute.xlu0 0
      %2121 = vperm.xlu0 %2120, %v2038
      %v2122 = vpop.permute.xlu0 %2121
      %2125 = vset.pattern.permute.xlu0 0
      %2126 = vperm.xlu0 %2125, %v2039
      %v2127 = vpop.permute.xlu0 %2126
      %2130 = vset.pattern.permute.xlu0 0
      %2131 = vperm.xlu0 %2130, %v2040
      %v2132 = vpop.permute.xlu0 %2131
      %2135 = vset.pattern.permute.xlu0 0
      %2136 = vperm.xlu0 %2135, %v2041
      %v2137 = vpop.permute.xlu0 %2136
      %2140 = vset.pattern.permute.xlu0 0
      %2141 = vperm.xlu0 %2140, %v2042
      %v2142 = vpop.permute.xlu0 %2141
      %2145 = vset.pattern.permute.xlu0 0
      %2146 = vperm.xlu0 %2145, %v2043
      %v2147 = vpop.permute.xlu0 %2146
      %2150 = vset.pattern.permute.xlu0 0
      %2151 = vperm.xlu0 %2150, %v2044
      %v2152 = vpop.permute.xlu0 %2151
      %2155 = vset.pattern.permute.xlu0 0
      %2156 = vperm.xlu0 %2155, %v2045
      %v2157 = vpop.permute.xlu0 %2156
      %2160 = vset.pattern.permute.xlu0 0
      %2161 = vperm.xlu0 %2160, %v2046
      %v2162 = vpop.permute.xlu0 %2161
      %2165 = vset.pattern.permute.xlu0 0
      %2166 = vperm.xlu0 %2165, %v2047
      %v2167 = vpop.permute.xlu0 %2166
      %2170 = vset.pattern.permute.xlu0 0
      %2171 = vperm.xlu0 %2170, %v2048
      %v2172 = vpop.permute.xlu0 %2171
      %2175 = vset.pattern.permute.xlu0 0
      %2176 = vperm.xlu0 %2175, %v2049
      %v2177 = vpop.permute.xlu0 %2176
      %2180 = vset.pattern.permute.xlu0 0
      %2181 = vperm.xlu0 %2180, %v2050
      %v2182 = vpop.permute.xlu0 %2181
      %2185 = vset.pattern.permute.xlu0 0
      %2186 = vperm.xlu0 %2185, %v2051
      %v2187 = vpop.permute.xlu0 %2186
      %2190 = vset.pattern.permute.xlu0 0
      %2191 = vperm.xlu0 %2190, %v2052
      %v2192 = vpop.permute.xlu0 %2191
      %2195 = vset.pattern.permute.xlu0 0
      %2196 = vperm.xlu0 %2195, %v2053
      %v2197 = vpop.permute.xlu0 %2196
      %2200 = vset.pattern.permute.xlu0 0
      %2201 = vperm.xlu0 %2200, %v2054
      %v2202 = vpop.permute.xlu0 %2201
      %2205 = vset.pattern.permute.xlu0 0
      %2206 = vperm.xlu0 %2205, %v2055
      %v2207 = vpop.permute.xlu0 %2206
      %2210 = vset.pattern.permute.xlu0 0
      %2211 = vperm.xlu0 %2210, %v2056
      %v2212 = vpop.permute.xlu0 %2211
      %2215 = vset.pattern.permute.xlu0 0
      %2216 = vperm.xlu0 %2215, %v2057
      %v2217 = vpop.permute.xlu0 %2216
      %v2220 = vlaneseq
      %v2221 = vshrl.u32 %v2220, 7
      %v2222 = vsub.s32 0, %v2221
      %v2223 = vrot.slane %v2058, %v2222
      %v2224 = vlaneseq
      %v2225 = vshrl.u32 %v2224, 7
      %v2226 = vsub.s32 1, %v2225
      %v2227 = vrot.slane %v2058, %v2226
      %v2230 = vmul.f32 %v2062, %v2223
      %v2231 = vmul.f32 %v2062, %v2227
      %v2232 = vmul.f32 %v2067, %v2223
      %v2233 = vmul.f32 %v2067, %v2227
      %v2234 = vmul.f32 %v2072, %v2223
      %v2235 = vmul.f32 %v2072, %v2227
      %v2236 = vmul.f32 %v2077, %v2223
      %v2237 = vmul.f32 %v2077, %v2227
      %v2238 = vmul.f32 %v2082, %v2223
      %v2239 = vmul.f32 %v2082, %v2227
      %v2240 = vmul.f32 %v2087, %v2223
      %v2241 = vmul.f32 %v2087, %v2227
      %v2242 = vmul.f32 %v2092, %v2223
      %v2243 = vmul.f32 %v2092, %v2227
      %v2244 = vmul.f32 %v2097, %v2223
      %v2245 = vmul.f32 %v2097, %v2227
      %v2246 = vmul.f32 %v2102, %v2223
      %v2247 = vmul.f32 %v2102, %v2227
      %v2248 = vmul.f32 %v2107, %v2223
      %v2249 = vmul.f32 %v2107, %v2227
      %v2250 = vmul.f32 %v2112, %v2223
      %v2251 = vmul.f32 %v2112, %v2227
      %v2252 = vmul.f32 %v2117, %v2223
      %v2253 = vmul.f32 %v2117, %v2227
      %v2254 = vmul.f32 %v2122, %v2223
      %v2255 = vmul.f32 %v2122, %v2227
      %v2256 = vmul.f32 %v2127, %v2223
      %v2257 = vmul.f32 %v2127, %v2227
      %v2258 = vmul.f32 %v2132, %v2223
      %v2259 = vmul.f32 %v2132, %v2227
      %v2260 = vmul.f32 %v2137, %v2223
      %v2261 = vmul.f32 %v2137, %v2227
      %v2262 = vmul.f32 %v2142, %v2223
      %v2263 = vmul.f32 %v2142, %v2227
      %v2264 = vmul.f32 %v2147, %v2223
      %v2265 = vmul.f32 %v2147, %v2227
      %v2266 = vmul.f32 %v2152, %v2223
      %v2267 = vmul.f32 %v2152, %v2227
      %v2268 = vmul.f32 %v2157, %v2223
      %v2269 = vmul.f32 %v2157, %v2227
      %v2270 = vmul.f32 %v2162, %v2223
      %v2271 = vmul.f32 %v2162, %v2227
      %v2272 = vmul.f32 %v2167, %v2223
      %v2273 = vmul.f32 %v2167, %v2227
      %v2274 = vmul.f32 %v2172, %v2223
      %v2275 = vmul.f32 %v2172, %v2227
      %v2276 = vmul.f32 %v2177, %v2223
      %v2277 = vmul.f32 %v2177, %v2227
      %v2278 = vmul.f32 %v2182, %v2223
      %v2279 = vmul.f32 %v2182, %v2227
      %v2280 = vmul.f32 %v2187, %v2223
      %v2281 = vmul.f32 %v2187, %v2227
      %v2282 = vmul.f32 %v2192, %v2223
      %v2283 = vmul.f32 %v2192, %v2227
      %v2284 = vmul.f32 %v2197, %v2223
      %v2285 = vmul.f32 %v2197, %v2227
      %v2286 = vmul.f32 %v2202, %v2223
      %v2287 = vmul.f32 %v2202, %v2227
      %v2288 = vmul.f32 %v2207, %v2223
      %v2289 = vmul.f32 %v2207, %v2227
      %v2290 = vmul.f32 %v2212, %v2223
      %v2291 = vmul.f32 %v2212, %v2227
      %v2292 = vmul.f32 %v2217, %v2223
      %v2293 = vmul.f32 %v2217, %v2227
      %v2294 = vadd.f32 %v1132, %v2230
      %v2295 = vadd.f32 %v1134, %v2231
      %v2296 = vadd.f32 %v1136, %v2232
      %v2297 = vadd.f32 %v1138, %v2233
      %v2298 = vadd.f32 %v1142, %v2234
      %v2299 = vadd.f32 %v1144, %v2235
      %v2300 = vadd.f32 %v1146, %v2236
      %v2301 = vadd.f32 %v1148, %v2237
      %v2302 = vadd.f32 %v1152, %v2238
      %v2303 = vadd.f32 %v1154, %v2239
      %v2304 = vadd.f32 %v1156, %v2240
      %v2305 = vadd.f32 %v1158, %v2241
      %v2306 = vadd.f32 %v1162, %v2242
      %v2307 = vadd.f32 %v1164, %v2243
      %v2308 = vadd.f32 %v1166, %v2244
      %v2309 = vadd.f32 %v1168, %v2245
      %v2310 = vadd.f32 %v1172, %v2246
      %v2311 = vadd.f32 %v1174, %v2247
      %v2312 = vadd.f32 %v1176, %v2248
      %v2313 = vadd.f32 %v1178, %v2249
      %v2314 = vadd.f32 %v1182, %v2250
      %v2315 = vadd.f32 %v1184, %v2251
      %v2316 = vadd.f32 %v1186, %v2252
      %v2317 = vadd.f32 %v1188, %v2253
      %v2318 = vadd.f32 %v1192, %v2254
      %v2319 = vadd.f32 %v1194, %v2255
      %v2320 = vadd.f32 %v1196, %v2256
      %v2321 = vadd.f32 %v1198, %v2257
      %v2322 = vadd.f32 %v1202, %v2258
      %v2323 = vadd.f32 %v1204, %v2259
      %v2324 = vadd.f32 %v1206, %v2260
      %v2325 = vadd.f32 %v1208, %v2261
      %v2326 = vadd.f32 %v1212, %v2262
      %v2327 = vadd.f32 %v1214, %v2263
      %v2328 = vadd.f32 %v1216, %v2264
      %v2329 = vadd.f32 %v1218, %v2265
      %v2330 = vadd.f32 %v1222, %v2266
      %v2331 = vadd.f32 %v1224, %v2267
      %v2332 = vadd.f32 %v1226, %v2268
      %v2333 = vadd.f32 %v1228, %v2269
      %v2334 = vadd.f32 %v1232, %v2270
      %v2335 = vadd.f32 %v1234, %v2271
      %v2336 = vadd.f32 %v1236, %v2272
      %v2337 = vadd.f32 %v1238, %v2273
      %v2338 = vadd.f32 %v1242, %v2274
      %v2339 = vadd.f32 %v1244, %v2275
      %v2340 = vadd.f32 %v1246, %v2276
      %v2341 = vadd.f32 %v1248, %v2277
      %v2342 = vadd.f32 %v1252, %v2278
      %v2343 = vadd.f32 %v1254, %v2279
      %v2344 = vadd.f32 %v1256, %v2280
      %v2345 = vadd.f32 %v1258, %v2281
      %v2346 = vadd.f32 %v1262, %v2282
      %v2347 = vadd.f32 %v1264, %v2283
      %v2348 = vadd.f32 %v1266, %v2284
      %v2349 = vadd.f32 %v1268, %v2285
      %v2350 = vadd.f32 %v1272, %v2286
      %v2351 = vadd.f32 %v1274, %v2287
      %v2352 = vadd.f32 %v1276, %v2288
      %v2353 = vadd.f32 %v1278, %v2289
      %v2354 = vadd.f32 %v1282, %v2290
      %v2355 = vadd.f32 %v1284, %v2291
      %v2356 = vadd.f32 %v1286, %v2292
      %v2357 = vadd.f32 %v1288, %v2293
      %v2358 = vmax.f32 %v2294, 0.0
      %v2359 = vmax.f32 %v2295, 0.0
      %v2360 = vmax.f32 %v2296, 0.0
      %v2361 = vmax.f32 %v2297, 0.0
      %v2362 = vmax.f32 %v2298, 0.0
      %v2363 = vmax.f32 %v2299, 0.0
      %v2364 = vmax.f32 %v2300, 0.0
      %v2365 = vmax.f32 %v2301, 0.0
      %v2366 = vmax.f32 %v2302, 0.0
      %v2367 = vmax.f32 %v2303, 0.0
      %v2368 = vmax.f32 %v2304, 0.0
      %v2369 = vmax.f32 %v2305, 0.0
      %v2370 = vmax.f32 %v2306, 0.0
      %v2371 = vmax.f32 %v2307, 0.0
      %v2372 = vmax.f32 %v2308, 0.0
      %v2373 = vmax.f32 %v2309, 0.0
      %v2374 = vmax.f32 %v2310, 0.0
      %v2375 = vmax.f32 %v2311, 0.0
      %v2376 = vmax.f32 %v2312, 0.0
      %v2377 = vmax.f32 %v2313, 0.0
      %v2378 = vmax.f32 %v2314, 0.0
      %v2379 = vmax.f32 %v2315, 0.0
      %v2380 = vmax.f32 %v2316, 0.0
      %v2381 = vmax.f32 %v2317, 0.0
      %v2382 = vmax.f32 %v2318, 0.0
      %v2383 = vmax.f32 %v2319, 0.0
      %v2384 = vmax.f32 %v2320, 0.0
      %v2385 = vmax.f32 %v2321, 0.0
      %v2386 = vmax.f32 %v2322, 0.0
      %v2387 = vmax.f32 %v2323, 0.0
      %v2388 = vmax.f32 %v2324, 0.0
      %v2389 = vmax.f32 %v2325, 0.0
      %v2390 = vmax.f32 %v2326, 0.0
      %v2391 = vmax.f32 %v2327, 0.0
      %v2392 = vmax.f32 %v2328, 0.0
      %v2393 = vmax.f32 %v2329, 0.0
      %v2394 = vmax.f32 %v2330, 0.0
      %v2395 = vmax.f32 %v2331, 0.0
      %v2396 = vmax.f32 %v2332, 0.0
      %v2397 = vmax.f32 %v2333, 0.0
      %v2398 = vmax.f32 %v2334, 0.0
      %v2399 = vmax.f32 %v2335, 0.0
      %v2400 = vmax.f32 %v2336, 0.0
      %v2401 = vmax.f32 %v2337, 0.0
      %v2402 = vmax.f32 %v2338, 0.0
      %v2403 = vmax.f32 %v2339, 0.0
      %v2404 = vmax.f32 %v2340, 0.0
      %v2405 = vmax.f32 %v2341, 0.0
      %v2406 = vmax.f32 %v2342, 0.0
      %v2407 = vmax.f32 %v2343, 0.0
      %v2408 = vmax.f32 %v2344, 0.0
      %v2409 = vmax.f32 %v2345, 0.0
      %v2410 = vmax.f32 %v2346, 0.0
      %v2411 = vmax.f32 %v2347, 0.0
      %v2412 = vmax.f32 %v2348, 0.0
      %v2413 = vmax.f32 %v2349, 0.0
      %v2414 = vmax.f32 %v2350, 0.0
      %v2415 = vmax.f32 %v2351, 0.0
      %v2416 = vmax.f32 %v2352, 0.0
      %v2417 = vmax.f32 %v2353, 0.0
      %v2418 = vmax.f32 %v2354, 0.0
      %v2419 = vmax.f32 %v2355, 0.0
      %v2420 = vmax.f32 %v2356, 0.0
      %v2421 = vmax.f32 %v2357, 0.0
      %v2422 = vpack.c.bf16 %v2360, %v2358
      %v2423 = vpack.c.bf16 %v2361, %v2359
      %v2424 = vpack.c.bf16 %v2364, %v2362
      %v2425 = vpack.c.bf16 %v2365, %v2363
      %v2426 = vpack.c.bf16 %v2368, %v2366
      %v2427 = vpack.c.bf16 %v2369, %v2367
      %v2428 = vpack.c.bf16 %v2372, %v2370
      %v2429 = vpack.c.bf16 %v2373, %v2371
      %v2430 = vpack.c.bf16 %v2376, %v2374
      %v2431 = vpack.c.bf16 %v2377, %v2375
      %v2432 = vpack.c.bf16 %v2380, %v2378
      %v2433 = vpack.c.bf16 %v2381, %v2379
      %v2434 = vpack.c.bf16 %v2384, %v2382
      %v2435 = vpack.c.bf16 %v2385, %v2383
      %v2436 = vpack.c.bf16 %v2388, %v2386
      %v2437 = vpack.c.bf16 %v2389, %v2387
      %v2438 = vpack.c.bf16 %v2392, %v2390
      %v2439 = vpack.c.bf16 %v2393, %v2391
      %v2440 = vpack.c.bf16 %v2396, %v2394
      %v2441 = vpack.c.bf16 %v2397, %v2395
      %v2442 = vpack.c.bf16 %v2400, %v2398
      %v2443 = vpack.c.bf16 %v2401, %v2399
      %v2444 = vpack.c.bf16 %v2404, %v2402
      %v2445 = vpack.c.bf16 %v2405, %v2403
      %v2446 = vpack.c.bf16 %v2408, %v2406
      %v2447 = vpack.c.bf16 %v2409, %v2407
      %v2448 = vpack.c.bf16 %v2412, %v2410
      %v2449 = vpack.c.bf16 %v2413, %v2411
      %v2450 = vpack.c.bf16 %v2416, %v2414
      %v2451 = vpack.c.bf16 %v2417, %v2415
      %v2452 = vpack.c.bf16 %v2420, %v2418
      %v2453 = vpack.c.bf16 %v2421, %v2419
      %v2454 = vld [vmem:[%s8] sm:$0xf]
      %v2455 = vld [vmem:[%s8 + $0x4] sm:$0xf]
      %v2456 = vld [vmem:[%s8 + $0x8] sm:$0xf]
      %v2457 = vld [vmem:[%s8 + $0xc] sm:$0xf]
      %v2458 = vld [vmem:[%s8 + $0x10] sm:$0xf]
      %v2459 = vld [vmem:[%s8 + $0x14] sm:$0xf]
      %v2460 = vld [vmem:[%s8 + $0x18] sm:$0xf]
      %v2461 = vld [vmem:[%s8 + $0x1c] sm:$0xf]
      %v2462 = vld [vmem:[%s8 + $0x20] sm:$0xf]
      %v2463 = vld [vmem:[%s8 + $0x24] sm:$0xf]
      %v2464 = vld [vmem:[%s8 + $0x28] sm:$0xf]
      %v2465 = vld [vmem:[%s8 + $0x2c] sm:$0xf]
      %v2466 = vld [vmem:[%s8 + $0x30] sm:$0xf]
      %v2467 = vld [vmem:[%s8 + $0x34] sm:$0xf]
      %v2468 = vld [vmem:[%s8 + $0x38] sm:$0xf]
      %v2469 = vld [vmem:[%s8 + $0x3c] sm:$0xf]
      %v2470 = vld [vmem:[%s8 + $0x40] sm:$0xf]
      %v2471 = vld [vmem:[%s8 + $0x44] sm:$0xf]
      %v2472 = vld [vmem:[%s8 + $0x48] sm:$0xf]
      %v2473 = vld [vmem:[%s8 + $0x4c] sm:$0xf]
      %v2474 = vld [vmem:[%s8 + $0x50] sm:$0xf]
      %v2475 = vld [vmem:[%s8 + $0x54] sm:$0xf]
      %v2476 = vld [vmem:[%s8 + $0x58] sm:$0xf]
      %v2477 = vld [vmem:[%s8 + $0x5c] sm:$0xf]
      %v2478 = vld [vmem:[%s8 + $0x60] sm:$0xf]
      %v2479 = vld [vmem:[%s8 + $0x64] sm:$0xf]
      %v2480 = vld [vmem:[%s8 + $0x68] sm:$0xf]
      %v2481 = vld [vmem:[%s8 + $0x6c] sm:$0xf]
      %v2482 = vld [vmem:[%s8 + $0x70] sm:$0xf]
      %v2483 = vld [vmem:[%s8 + $0x74] sm:$0xf]
      %v2484 = vld [vmem:[%s8 + $0x78] sm:$0xf]
      %v2485 = vld [vmem:[%s8 + $0x7c] sm:$0xf]
      %v2486 = vld [vmem:[%s9] sm:$0x1]
      %v2488 = vlaneseq
      %v2489 = vshrl.u32 %v2488, 7
      %v2490 = vsub.s32 0, %v2489
      %v2491 = vrot.slane %v2486, %v2490
      %v2525 = vunpack.c.l.b16 %v2454
      %v2526 = vunpack.c.l.b16 %v2455
      %v2527 = vunpack.c.l.b16 %v2456
      %v2528 = vunpack.c.l.b16 %v2457
      %v2529 = vunpack.c.l.b16 %v2458
      %v2530 = vunpack.c.l.b16 %v2459
      %v2531 = vunpack.c.l.b16 %v2460
      %v2532 = vunpack.c.l.b16 %v2461
      %v2533 = vunpack.c.l.b16 %v2462
      %v2534 = vunpack.c.l.b16 %v2463
      %v2535 = vunpack.c.l.b16 %v2464
      %v2536 = vunpack.c.l.b16 %v2465
      %v2537 = vunpack.c.l.b16 %v2466
      %v2538 = vunpack.c.l.b16 %v2467
      %v2539 = vunpack.c.l.b16 %v2468
      %v2540 = vunpack.c.l.b16 %v2469
      %v2541 = vunpack.c.l.b16 %v2470
      %v2542 = vunpack.c.l.b16 %v2471
      %v2543 = vunpack.c.l.b16 %v2472
      %v2544 = vunpack.c.l.b16 %v2473
      %v2545 = vunpack.c.l.b16 %v2474
      %v2546 = vunpack.c.l.b16 %v2475
      %v2547 = vunpack.c.l.b16 %v2476
      %v2548 = vunpack.c.l.b16 %v2477
      %v2549 = vunpack.c.l.b16 %v2478
      %v2550 = vunpack.c.l.b16 %v2479
      %v2551 = vunpack.c.l.b16 %v2480
      %v2552 = vunpack.c.l.b16 %v2481
      %v2553 = vunpack.c.l.b16 %v2482
      %v2554 = vunpack.c.l.b16 %v2483
      %v2555 = vunpack.c.l.b16 %v2484
      %v2556 = vunpack.c.l.b16 %v2485
      %v2557 = vpack.c.b16 %v2526, %v2525
      %v2558 = vpack.c.b16 %v2528, %v2527
      %v2559 = vpack.c.b16 %v2530, %v2529
      %v2560 = vpack.c.b16 %v2532, %v2531
      %v2561 = vpack.c.b16 %v2534, %v2533
      %v2562 = vpack.c.b16 %v2536, %v2535
      %v2563 = vpack.c.b16 %v2538, %v2537
      %v2564 = vpack.c.b16 %v2540, %v2539
      %v2565 = vpack.c.b16 %v2542, %v2541
      %v2566 = vpack.c.b16 %v2544, %v2543
      %v2567 = vpack.c.b16 %v2546, %v2545
      %v2568 = vpack.c.b16 %v2548, %v2547
      %v2569 = vpack.c.b16 %v2550, %v2549
      %v2570 = vpack.c.b16 %v2552, %v2551
      %v2571 = vpack.c.b16 %v2554, %v2553
      %v2572 = vpack.c.b16 %v2556, %v2555
      %2589 = vmatprep.subr.bf16.mxu0 0
      %2590 = vmatpush1.bf16.msra.mxu0 %v2557
      %2591 = vmatprep.subr.bf16.mxu0 0
      %2592 = vmatpush1.bf16.msra.mxu0 %v2558
      %2593 = vmatprep.subr.bf16.mxu0 0
      %2594 = vmatpush1.bf16.msra.mxu0 %v2559
      %2595 = vmatprep.subr.bf16.mxu0 0
      %2596 = vmatpush1.bf16.msra.mxu0 %v2560
      %2597 = vmatprep.subr.bf16.mxu0 0
      %2598 = vmatpush1.bf16.msra.mxu0 %v2561
      %2599 = vmatprep.subr.bf16.mxu0 0
      %2600 = vmatpush1.bf16.msra.mxu0 %v2562
      %2601 = vmatprep.subr.bf16.mxu0 0
      %2602 = vmatpush1.bf16.msra.mxu0 %v2563
      %2603 = vmatprep.subr.bf16.mxu0 0
      %2604 = vmatpush1.bf16.msra.mxu0 %v2564
      %2605 = vmatprep.subr.bf16.mxu0 0
      %2606 = vmatpush1.bf16.msra.mxu0 %v2565
      %2607 = vmatprep.subr.bf16.mxu0 0
      %2608 = vmatpush1.bf16.msra.mxu0 %v2566
      %2609 = vmatprep.subr.bf16.mxu0 0
      %2610 = vmatpush1.bf16.msra.mxu0 %v2567
      %2611 = vmatprep.subr.bf16.mxu0 0
      %2612 = vmatpush1.bf16.msra.mxu0 %v2568
      %2613 = vmatprep.subr.bf16.mxu0 0
      %2614 = vmatpush1.bf16.msra.mxu0 %v2569
      %2615 = vmatprep.subr.bf16.mxu0 0
      %2616 = vmatpush1.bf16.msra.mxu0 %v2570
      %2617 = vmatprep.subr.bf16.mxu0 0
      %2618 = vmatpush1.bf16.msra.mxu0 %v2571
      %2619 = vmatprep.subr.bf16.mxu0 0
      %2620 = vmatpush1.bf16.msra.mxu0 %v2572
      %2621 = vmatprep.mubr.bf16.mxu0 %v2423
      %2622 = vmatmul.mubr.bf16.gmra.mrb[0].mxu0 %v2422
      %v2623 = vpop.f32.mrb[0].mxu0
      %v2624 = vadd.f32 %v2491, %v2623
      %v2625 = vpop.f32.mrb[0].mxu0
      %v2626 = vpop.f32.mrb[0].mxu0
      %v2627 = vadd.f32 %v2491, %v2626
      %v2628 = vpop.f32.mrb[0].mxu0
      %2629 = vmatprep.mubr.bf16.mxu0 %v2425
      %2630 = vmatmul.mubr.bf16.gmra.mrb[0].mxu0 %v2424
      %v2631 = vpop.f32.mrb[0].mxu0
      %v2632 = vadd.f32 %v2491, %v2631
      %v2633 = vpop.f32.mrb[0].mxu0
      %v2634 = vpop.f32.mrb[0].mxu0
      %v2635 = vadd.f32 %v2491, %v2634
      %v2636 = vpop.f32.mrb[0].mxu0
      %2637 = vmatprep.mubr.bf16.mxu0 %v2427
      %2638 = vmatmul.mubr.bf16.gmra.mrb[0].mxu0 %v2426
      %v2639 = vpop.f32.mrb[0].mxu0
      %v2640 = vadd.f32 %v2491, %v2639
      %v2641 = vpop.f32.mrb[0].mxu0
      %v2642 = vpop.f32.mrb[0].mxu0
      %v2643 = vadd.f32 %v2491, %v2642
      %v2644 = vpop.f32.mrb[0].mxu0
      %2645 = vmatprep.mubr.bf16.mxu0 %v2429
      %2646 = vmatmul.mubr.bf16.gmra.mrb[0].mxu0 %v2428
      %v2647 = vpop.f32.mrb[0].mxu0
      %v2648 = vadd.f32 %v2491, %v2647
      %v2649 = vpop.f32.mrb[0].mxu0
      %v2650 = vpop.f32.mrb[0].mxu0
      %v2651 = vadd.f32 %v2491, %v2650
      %v2652 = vpop.f32.mrb[0].mxu0
      %2653 = vmatprep.mubr.bf16.mxu0 %v2431
      %2654 = vmatmul.mubr.bf16.gmra.mrb[0].mxu0 %v2430
      %v2655 = vpop.f32.mrb[0].mxu0
      %v2656 = vadd.f32 %v2491, %v2655
      %v2657 = vpop.f32.mrb[0].mxu0
      %v2658 = vpop.f32.mrb[0].mxu0
      %v2659 = vadd.f32 %v2491, %v2658
      %v2660 = vpop.f32.mrb[0].mxu0
      %2661 = vmatprep.mubr.bf16.mxu0 %v2433
      %2662 = vmatmul.mubr.bf16.gmra.mrb[0].mxu0 %v2432
      %v2663 = vpop.f32.mrb[0].mxu0
      %v2664 = vadd.f32 %v2491, %v2663
      %v2665 = vpop.f32.mrb[0].mxu0
      %v2666 = vpop.f32.mrb[0].mxu0
      %v2667 = vadd.f32 %v2491, %v2666
      %v2668 = vpop.f32.mrb[0].mxu0
      %2669 = vmatprep.mubr.bf16.mxu0 %v2435
      %2670 = vmatmul.mubr.bf16.gmra.mrb[0].mxu0 %v2434
      %v2671 = vpop.f32.mrb[0].mxu0
      %v2672 = vadd.f32 %v2491, %v2671
      %v2673 = vpop.f32.mrb[0].mxu0
      %v2674 = vpop.f32.mrb[0].mxu0
      %v2675 = vadd.f32 %v2491, %v2674
      %v2676 = vpop.f32.mrb[0].mxu0
      %2677 = vmatprep.mubr.bf16.mxu0 %v2437
      %2678 = vmatmul.mubr.bf16.gmra.mrb[0].mxu0 %v2436
      %v2679 = vpop.f32.mrb[0].mxu0
      %v2680 = vadd.f32 %v2491, %v2679
      %v2681 = vpop.f32.mrb[0].mxu0
      %v2682 = vpop.f32.mrb[0].mxu0
      %v2683 = vadd.f32 %v2491, %v2682
      %v2684 = vpop.f32.mrb[0].mxu0
      %2685 = vmatprep.mubr.bf16.mxu0 %v2439
      %2686 = vmatmul.mubr.bf16.gmra.mrb[0].mxu0 %v2438
      %v2687 = vpop.f32.mrb[0].mxu0
      %v2688 = vadd.f32 %v2491, %v2687
      %v2689 = vpop.f32.mrb[0].mxu0
      %v2690 = vpop.f32.mrb[0].mxu0
      %v2691 = vadd.f32 %v2491, %v2690
      %v2692 = vpop.f32.mrb[0].mxu0
      %2693 = vmatprep.mubr.bf16.mxu0 %v2441
      %2694 = vmatmul.mubr.bf16.gmra.mrb[0].mxu0 %v2440
      %v2695 = vpop.f32.mrb[0].mxu0
      %v2696 = vadd.f32 %v2491, %v2695
      %v2697 = vpop.f32.mrb[0].mxu0
      %v2698 = vpop.f32.mrb[0].mxu0
      %v2699 = vadd.f32 %v2491, %v2698
      %v2700 = vpop.f32.mrb[0].mxu0
      %2701 = vmatprep.mubr.bf16.mxu0 %v2443
      %2702 = vmatmul.mubr.bf16.gmra.mrb[0].mxu0 %v2442
      %v2703 = vpop.f32.mrb[0].mxu0
      %v2704 = vadd.f32 %v2491, %v2703
      %v2705 = vpop.f32.mrb[0].mxu0
      %v2706 = vpop.f32.mrb[0].mxu0
      %v2707 = vadd.f32 %v2491, %v2706
      %v2708 = vpop.f32.mrb[0].mxu0
      %2709 = vmatprep.mubr.bf16.mxu0 %v2445
      %2710 = vmatmul.mubr.bf16.gmra.mrb[0].mxu0 %v2444
      %v2711 = vpop.f32.mrb[0].mxu0
      %v2712 = vadd.f32 %v2491, %v2711
      %v2713 = vpop.f32.mrb[0].mxu0
      %v2714 = vpop.f32.mrb[0].mxu0
      %v2715 = vadd.f32 %v2491, %v2714
      %v2716 = vpop.f32.mrb[0].mxu0
      %2717 = vmatprep.mubr.bf16.mxu0 %v2447
      %2718 = vmatmul.mubr.bf16.gmra.mrb[0].mxu0 %v2446
      %v2719 = vpop.f32.mrb[0].mxu0
      %v2720 = vadd.f32 %v2491, %v2719
      %v2721 = vpop.f32.mrb[0].mxu0
      %v2722 = vpop.f32.mrb[0].mxu0
      %v2723 = vadd.f32 %v2491, %v2722
      %v2724 = vpop.f32.mrb[0].mxu0
      %2725 = vmatprep.mubr.bf16.mxu0 %v2449
      %2726 = vmatmul.mubr.bf16.gmra.mrb[0].mxu0 %v2448
      %v2727 = vpop.f32.mrb[0].mxu0
      %v2728 = vadd.f32 %v2491, %v2727
      %v2729 = vpop.f32.mrb[0].mxu0
      %v2730 = vpop.f32.mrb[0].mxu0
      %v2731 = vadd.f32 %v2491, %v2730
      %v2732 = vpop.f32.mrb[0].mxu0
      %2733 = vmatprep.mubr.bf16.mxu0 %v2451
      %2734 = vmatmul.mubr.bf16.gmra.mrb[0].mxu0 %v2450
      %v2735 = vpop.f32.mrb[0].mxu0
      %v2736 = vadd.f32 %v2491, %v2735
      %v2737 = vpop.f32.mrb[0].mxu0
      %v2738 = vpop.f32.mrb[0].mxu0
      %v2739 = vadd.f32 %v2491, %v2738
      %v2740 = vpop.f32.mrb[0].mxu0
      %2741 = vmatprep.mubr.bf16.mxu0 %v2453
      %2742 = vmatmul.mubr.bf16.gmra.mrb[0].mxu0 %v2452
      %v2743 = vpop.f32.mrb[0].mxu0
      %v2744 = vadd.f32 %v2491, %v2743
      %v2745 = vpop.f32.mrb[0].mxu0
      %v2746 = vpop.f32.mrb[0].mxu0
      %v2747 = vadd.f32 %v2491, %v2746
      %v2748 = vpop.f32.mrb[0].mxu0
      %2749 = vdwg.mxu0
      %2782 = vrot.lane.b32.xlu0 %v2624, 1
      %v2783 = vpop.permute.xlu0 %2782
      %2784 = vrot.lane.b32.xlu0 %v2627, 1
      %v2785 = vpop.permute.xlu0 %2784
      %2786 = vrot.lane.b32.xlu0 %v2632, 1
      %v2787 = vpop.permute.xlu0 %2786
      %2788 = vrot.lane.b32.xlu0 %v2635, 1
      %v2789 = vpop.permute.xlu0 %2788
      %2790 = vrot.lane.b32.xlu0 %v2640, 1
      %v2791 = vpop.permute.xlu0 %2790
      %2792 = vrot.lane.b32.xlu0 %v2643, 1
      %v2793 = vpop.permute.xlu0 %2792
      %2794 = vrot.lane.b32.xlu0 %v2648, 1
      %v2795 = vpop.permute.xlu0 %2794
      %2796 = vrot.lane.b32.xlu0 %v2651, 1
      %v2797 = vpop.permute.xlu0 %2796
      %2798 = vrot.lane.b32.xlu0 %v2656, 1
      %v2799 = vpop.permute.xlu0 %2798
      %2800 = vrot.lane.b32.xlu0 %v2659, 1
      %v2801 = vpop.permute.xlu0 %2800
      %2802 = vrot.lane.b32.xlu0 %v2664, 1
      %v2803 = vpop.permute.xlu0 %2802
      %2804 = vrot.lane.b32.xlu0 %v2667, 1
      %v2805 = vpop.permute.xlu0 %2804
      %2806 = vrot.lane.b32.xlu0 %v2672, 1
      %v2807 = vpop.permute.xlu0 %2806
      %2808 = vrot.lane.b32.xlu0 %v2675, 1
      %v2809 = vpop.permute.xlu0 %2808
      %2810 = vrot.lane.b32.xlu0 %v2680, 1
      %v2811 = vpop.permute.xlu0 %2810
      %2812 = vrot.lane.b32.xlu0 %v2683, 1
      %v2813 = vpop.permute.xlu0 %2812
      %2814 = vrot.lane.b32.xlu0 %v2688, 1
      %v2815 = vpop.permute.xlu0 %2814
      %2816 = vrot.lane.b32.xlu0 %v2691, 1
      %v2817 = vpop.permute.xlu0 %2816
      %2818 = vrot.lane.b32.xlu0 %v2696, 1
      %v2819 = vpop.permute.xlu0 %2818
      %2820 = vrot.lane.b32.xlu0 %v2699, 1
      %v2821 = vpop.permute.xlu0 %2820
      %2822 = vrot.lane.b32.xlu0 %v2704, 1
      %v2823 = vpop.permute.xlu0 %2822
      %2824 = vrot.lane.b32.xlu0 %v2707, 1
      %v2825 = vpop.permute.xlu0 %2824
      %2826 = vrot.lane.b32.xlu0 %v2712, 1
      %v2827 = vpop.permute.xlu0 %2826
      %2828 = vrot.lane.b32.xlu0 %v2715, 1
      %v2829 = vpop.permute.xlu0 %2828
      %2830 = vrot.lane.b32.xlu0 %v2720, 1
      %v2831 = vpop.permute.xlu0 %2830
      %2832 = vrot.lane.b32.xlu0 %v2723, 1
      %v2833 = vpop.permute.xlu0 %2832
      %2834 = vrot.lane.b32.xlu0 %v2728, 1
      %v2835 = vpop.permute.xlu0 %2834
      %2836 = vrot.lane.b32.xlu0 %v2731, 1
      %v2837 = vpop.permute.xlu0 %2836
      %2838 = vrot.lane.b32.xlu0 %v2736, 1
      %v2839 = vpop.permute.xlu0 %2838
      %2840 = vrot.lane.b32.xlu0 %v2739, 1
      %v2841 = vpop.permute.xlu0 %2840
      %2842 = vrot.lane.b32.xlu0 %v2744, 1
      %v2843 = vpop.permute.xlu0 %2842
      %2844 = vrot.lane.b32.xlu0 %v2747, 1
      %v2845 = vpop.permute.xlu0 %2844
      %vm2878 = vcmask 7168
      %v2879 = vsel %vm2878, %v2026, %v2783
      %v2880 = vsel %vm2878, %v2027, %v2785
      %v2881 = vsel %vm2878, %v2028, %v2787
      %v2882 = vsel %vm2878, %v2029, %v2789
      %v2883 = vsel %vm2878, %v2030, %v2791
      %v2884 = vsel %vm2878, %v2031, %v2793
      %v2885 = vsel %vm2878, %v2032, %v2795
      %v2886 = vsel %vm2878, %v2033, %v2797
      %v2887 = vsel %vm2878, %v2034, %v2799
      %v2888 = vsel %vm2878, %v2035, %v2801
      %v2889 = vsel %vm2878, %v2036, %v2803
      %v2890 = vsel %vm2878, %v2037, %v2805
      %v2891 = vsel %vm2878, %v2038, %v2807
      %v2892 = vsel %vm2878, %v2039, %v2809
      %v2893 = vsel %vm2878, %v2040, %v2811
      %v2894 = vsel %vm2878, %v2041, %v2813
      %v2895 = vsel %vm2878, %v2042, %v2815
      %v2896 = vsel %vm2878, %v2043, %v2817
      %v2897 = vsel %vm2878, %v2044, %v2819
      %v2898 = vsel %vm2878, %v2045, %v2821
      %v2899 = vsel %vm2878, %v2046, %v2823
      %v2900 = vsel %vm2878, %v2047, %v2825
      %v2901 = vsel %vm2878, %v2048, %v2827
      %v2902 = vsel %vm2878, %v2049, %v2829
      %v2903 = vsel %vm2878, %v2050, %v2831
      %v2904 = vsel %vm2878, %v2051, %v2833
      %v2905 = vsel %vm2878, %v2052, %v2835
      %v2906 = vsel %vm2878, %v2053, %v2837
      %v2907 = vsel %vm2878, %v2054, %v2839
      %v2908 = vsel %vm2878, %v2055, %v2841
      %v2909 = vsel %vm2878, %v2056, %v2843
      %v2910 = vsel %vm2878, %v2057, %v2845
      %vm2911 = vcmask 31744
      %2912 = vst.msk [vmem:[%s366] sm:$0xff] %vm2911, %v2879
      %2913 = vst.msk [vmem:[%s366 + $0x8] sm:$0xff] %vm2911, %v2880
      %2914 = vst.msk [vmem:[%s366 + $0x10] sm:$0xff] %vm2911, %v2881
      %2915 = vst.msk [vmem:[%s366 + $0x18] sm:$0xff] %vm2911, %v2882
      %2916 = vst.msk [vmem:[%s366 + $0x20] sm:$0xff] %vm2911, %v2883
      %2917 = vst.msk [vmem:[%s366 + $0x28] sm:$0xff] %vm2911, %v2884
      %2918 = vst.msk [vmem:[%s366 + $0x30] sm:$0xff] %vm2911, %v2885
      %2919 = vst.msk [vmem:[%s366 + $0x38] sm:$0xff] %vm2911, %v2886
      %2920 = vst.msk [vmem:[%s366 + $0x40] sm:$0xff] %vm2911, %v2887
      %2921 = vst.msk [vmem:[%s366 + $0x48] sm:$0xff] %vm2911, %v2888
      %2922 = vst.msk [vmem:[%s366 + $0x50] sm:$0xff] %vm2911, %v2889
      %2923 = vst.msk [vmem:[%s366 + $0x58] sm:$0xff] %vm2911, %v2890
      %2924 = vst.msk [vmem:[%s366 + $0x60] sm:$0xff] %vm2911, %v2891
      %2925 = vst.msk [vmem:[%s366 + $0x68] sm:$0xff] %vm2911, %v2892
      %2926 = vst.msk [vmem:[%s366 + $0x70] sm:$0xff] %vm2911, %v2893
      %2927 = vst.msk [vmem:[%s366 + $0x78] sm:$0xff] %vm2911, %v2894
      %2928 = vst.msk [vmem:[%s366 + $0x80] sm:$0xff] %vm2911, %v2895
      %2929 = vst.msk [vmem:[%s366 + $0x88] sm:$0xff] %vm2911, %v2896
      %2930 = vst.msk [vmem:[%s366 + $0x90] sm:$0xff] %vm2911, %v2897
      %2931 = vst.msk [vmem:[%s366 + $0x98] sm:$0xff] %vm2911, %v2898
      %2932 = vst.msk [vmem:[%s366 + $0xa0] sm:$0xff] %vm2911, %v2899
      %2933 = vst.msk [vmem:[%s366 + $0xa8] sm:$0xff] %vm2911, %v2900
      %2934 = vst.msk [vmem:[%s366 + $0xb0] sm:$0xff] %vm2911, %v2901
      %2935 = vst.msk [vmem:[%s366 + $0xb8] sm:$0xff] %vm2911, %v2902
      %2936 = vst.msk [vmem:[%s366 + $0xc0] sm:$0xff] %vm2911, %v2903
      %2937 = vst.msk [vmem:[%s366 + $0xc8] sm:$0xff] %vm2911, %v2904
      %2938 = vst.msk [vmem:[%s366 + $0xd0] sm:$0xff] %vm2911, %v2905
      %2939 = vst.msk [vmem:[%s366 + $0xd8] sm:$0xff] %vm2911, %v2906
      %2940 = vst.msk [vmem:[%s366 + $0xe0] sm:$0xff] %vm2911, %v2907
      %2941 = vst.msk [vmem:[%s366 + $0xe8] sm:$0xff] %vm2911, %v2908
      %2942 = vst.msk [vmem:[%s366 + $0xf0] sm:$0xff] %vm2911, %v2909
      %2943 = vst.msk [vmem:[%s366 + $0xf8] sm:$0xff] %vm2911, %v2910
      %s2944 = smul.u32 32, %s23
      %p2945 = scmp.lt.s32.totalorder %s2944, 63
      %s2946 = scalar_select %p2945, %s2944, 63
      %s2947 = smul.addr %s2946, 8
      %s2948 = scalar_lea.vmem %s10, %s2947
      // Predicated region
      $region61: #{tpu_custom_call.1} parent=59 // pred_check
        %p2949 = pneg %p256
      $region62: #{tpu_custom_call.1} parent=59 // pred_check_branch
        %2951 = sbr.rel (%p2949) target = $region64
      $region63: #{tpu_custom_call.1} parent=59 // pred_region
        %s2952 = smul.u32 32, %s23
      $region64: #{tpu_custom_call.1} parent=59 // pred_fallthru
        _
    $region60: #{tpu_custom_call.1} parent=5 // pred_fallthru
      _
    %p2953 = scmp.le.s32.totalorder 2, %s18
    // Predicated region
    $region65: #{tpu_custom_call.1} parent=5 // pred_check
      %p2954 = pneg %p2953
    $region66: #{tpu_custom_call.1} parent=5 // pred_check_branch
      %2956 = sbr.rel (%p2954) target = $region68
    $region67: #{tpu_custom_call.1} parent=5 // pred_region
      %s2957 = ssub.s32 %s18, 2
      // Predicated region
      $region69: #{tpu_custom_call.1} parent=67 // pred_check
        %p2958 = pneg %p262
      $region70: #{tpu_custom_call.1} parent=67 // pred_check_branch
        %2960 = sbr.rel (%p2958) target = $region72
      $region71: #{tpu_custom_call.1} parent=67 // pred_region
        %s2961 = smul.u32 32, %s24
        %p2962 = scmp.lt.s32.totalorder %s2961, 63
        %s2963 = scalar_select %p2962, %s2961, 63
        %s2964 = smul.addr %s2963, 8
        %s2965 = scalar_lea.vmem %s10, %s2964
      $region72: #{tpu_custom_call.1} parent=67 // pred_fallthru
        _
    $region68: #{tpu_custom_call.1} parent=5 // pred_fallthru
      _
  $region6: #{tpu_custom_call.1} parent=0 // loop_footer
    %s22 = sadd.s32 1, %s18
  $region7: #{tpu_custom_call.1} parent=0 // loop_footer_branch
    %17 = sbr.rel target = $region3
  $region8: #{tpu_custom_call.1} parent=0 // loop_exit
    _

</llo_original>
